<compile_context>
chip_gen: v7x
topology: tpu7x:2x2x1
jax: 0.10.0
libtpu: 0.0.40
codegen_flags: <defaults>
</compile_context>

<pallas_src>
import functools

import numpy as np

import jax
import jax.numpy as jnp
from jax.experimental import pallas as pl
from jax.experimental.pallas import tpu as pltpu


# ----------------------------------------------------------------------------
# Fused Pallas kernel: conv3x3 -> dw3x3 -> pw1x1 -> GAP -> linear
# ----------------------------------------------------------------------------
def _fused_mobilenet_kernel(x_ref, m1_ref, b1_ref, mdw_ref, bdw_ref,
                            mpw_ref, bpw_ref, wfc_ref, bfc_ref,
                            o_ref, a1p_ref, *, H, W, C1, inv_hw):
    WP = W + 2
    xin = x_ref[0]                                      # (H+2, (W+2)*CIN) f32

    # ---- Conv2d(CIN, C1, 3, padding=1) + ReLU -------------------------------
    # 3 banded MXU matmuls (one per vertical tap); horizontal taps and the
    # channel contraction are folded into the (WP*CIN, WP*C1) band matrix.
    # Output is produced directly in the width-padded (H, (W+2)*C1) layout
    # (the pad columns of m1/b1 are zero, so ReLU keeps them exactly 0).
    acc1 = jnp.zeros((H, WP * C1), jnp.float32)
    for kh in range(3):
        lhs = xin[kh:kh + H, :].astype(jnp.bfloat16)
        acc1 = acc1 + jnp.dot(lhs, m1_ref[kh],
                              preferred_element_type=jnp.float32)
    a1 = jnp.maximum(acc1 + b1_ref[...], 0.0)           # (H, WP*C1)

    # Vertical zero padding lives in a VMEM scratch slab (rows 0 and H+1 = 0).
    zrow = jnp.zeros((1, WP * C1), jnp.float32)
    a1p_ref[pl.ds(0, 1), :] = zrow
    a1p_ref[pl.ds(H + 1, 1), :] = zrow
    a1p_ref[pl.ds(1, H), :] = a1

    # ---- depthwise Conv2d(C1, C1, 3, padding=1, groups=C1) + ReLU -----------
    # Same trick: 3 banded (block-sparse) MXU matmuls over the padded slab.
    acc2 = jnp.zeros((H, W * C1), jnp.float32)
    for kh in range(3):
        lhs = a1p_ref[pl.ds(kh, H), :].astype(jnp.bfloat16)
        acc2 = acc2 + jnp.dot(lhs, mdw_ref[kh],
                              preferred_element_type=jnp.float32)
    a2 = jnp.maximum(acc2 + bdw_ref[...], 0.0)          # (H, W*C1)

    # ---- pointwise Conv2d(C1, C2, 1) + ReLU (block-diagonal matmul) ---------
    acc3 = jnp.dot(a2.astype(jnp.bfloat16), mpw_ref[...],
                   preferred_element_type=jnp.float32)
    a3 = jnp.maximum(acc3 + bpw_ref[...], 0.0)          # (H, W*C2)

    # ---- global average pool + Linear(C2, NCLS) -----------------------------
    # GAP commutes with the linear layer, so it is fused into the FC matmul:
    # logits = (1/(H*W)) * sum_rows(a3 @ Wfc_tiled) + b_fc.
    s = jnp.dot(a3.astype(jnp.bfloat16), wfc_ref[...],
                preferred_element_type=jnp.float32)     # (H, NCLS)
    logits = jnp.sum(s, axis=0, keepdims=True) * inv_hw + bfc_ref[...]
    o_ref[0] = logits


def fused_forward(x_nchw, ops):
    """Runs conv1 -> dw -> pw -> GAP -> fc through one Pallas kernel.

    x_nchw: (N, CIN, H, W) float32 (PyTorch layout).  Returns (N, NCLS) f32.
    """
    N, CIN, H, W = x_nchw.shape
    HP, WP = H + 2, W + 2
    C1 = ops["m1"].shape[2] // WP
    C2 = ops["mpw"].shape[1] // W
    NCLS = ops["wfct"].shape[1]

    # NCHW -> NHWC -> zero pad -> fold (W, C) onto the 128-wide lane axis.
    x_nhwc = jnp.transpose(x_nchw, (0, 2, 3, 1)).astype(jnp.float32)
    xp = jnp.pad(x_nhwc, ((0, 0), (1, 1), (1, 1), (0, 0)))
    x_flat = xp.reshape(N, HP, WP * CIN)

    kernel = functools.partial(_fused_mobilenet_kernel, H=H, W=W, C1=C1,
                               inv_hw=1.0 / (H * W))
    full3 = lambda n: (0, 0, 0)
    full2 = lambda n: (0, 0)
    # NOTE: at large H*W the row (H) axis of the flat slabs would be tiled
    # with an extra grid dimension; at these small shapes everything fits
    # comfortably even in v7x's 64 MiB VMEM.
    out = pl.pallas_call(
        kernel,
        out_shape=jax.ShapeDtypeStruct((N, 1, NCLS), jnp.float32),
        grid=(N,),
        in_specs=[
            pl.BlockSpec((1, HP, WP * CIN), lambda n: (n, 0, 0)),   # input
            pl.BlockSpec((3, WP * CIN, WP * C1), full3),            # conv1 bands
            pl.BlockSpec((1, WP * C1), full2),                      # conv1 bias
            pl.BlockSpec((3, WP * C1, W * C1), full3),              # dw bands
            pl.BlockSpec((1, W * C1), full2),                       # dw bias
            pl.BlockSpec((W * C1, W * C2), full2),                  # pw block-diag
            pl.BlockSpec((1, W * C2), full2),                       # pw bias
            pl.BlockSpec((W * C2, NCLS), full2),                    # fc (GAP-fused)
            pl.BlockSpec((1, NCLS), full2),                         # fc bias
        ],
        out_specs=pl.BlockSpec((1, 1, NCLS), lambda n: (n, 0, 0)),
        scratch_shapes=[pltpu.VMEM((HP, WP * C1), jnp.float32)],
        compiler_params=pltpu.CompilerParams(
            dimension_semantics=("parallel",)),
    )(x_flat, ops["m1"], ops["b1t"], ops["mdw"], ops["bdt"],
      ops["mpw"], ops["bpt"], ops["wfct"], ops["bfc"])
    return out.reshape(N, NCLS)


# ----------------------------------------------------------------------------
# Host-side (one-time) re-packing of the layer weights into band matrices that
# act on lane-dense (H, W*C) activation slabs.
# ----------------------------------------------------------------------------
def _build_fused_operands(params, W):
    WP = W + 2
    w1 = np.asarray(params["conv1_w"], np.float32)          # (C1, CIN, 3, 3)
    b1 = np.asarray(params["conv1_b"], np.float32)
    wd = np.asarray(params["dw_w"], np.float32)              # (C1, 1, 3, 3)
    bd = np.asarray(params["dw_b"], np.float32)
    wp = np.asarray(params["pw_w"], np.float32)[:, :, 0, 0]  # (C2, C1)
    bp = np.asarray(params["pw_b"], np.float32)
    wf = np.asarray(params["fc_w"], np.float32)              # (NCLS, C2)
    bf = np.asarray(params["fc_b"], np.float32)
    C1, CIN = w1.shape[0], w1.shape[1]
    C2, NCLS = wp.shape[0], wf.shape[0]

    # conv1: out[h, (w+1)*C1+co] = sum_{kh,kw,ci} xp[h+kh, (w+kw)*CIN+ci] * w1[co,ci,kh,kw]
    m1 = np.zeros((3, WP * CIN, WP * C1), np.float32)
    b1t = np.zeros((1, WP * C1), np.float32)
    for kh in range(3):
        for w in range(W):
            p_out = w + 1
            for kw in range(3):
                p_in = w + kw
                m1[kh, p_in * CIN:(p_in + 1) * CIN,
                       p_out * C1:(p_out + 1) * C1] = w1[:, :, kh, kw].T
    for w in range(W):
        b1t[0, (w + 1) * C1:(w + 2) * C1] = b1

    # depthwise: out[h, w*C1+c] = sum_{kh,kw} a1p[h+kh, (w+kw)*C1+c] * wd[c,0,kh,kw]
    mdw = np.zeros((3, WP * C1, W * C1), np.float32)
    for kh in range(3):
        for w in range(W):
            for kw in range(3):
                p_in = w + kw
                for c in range(C1):
                    mdw[kh, p_in * C1 + c, w * C1 + c] = wd[c, 0, kh, kw]
    bdt = np.tile(bd, W).reshape(1, W * C1)

    # pointwise 1x1: block-diagonal channel mix per pixel column.
    mpw = np.zeros((W * C1, W * C2), np.float32)
    for w in range(W):
        mpw[w * C1:(w + 1) * C1, w * C2:(w + 1) * C2] = wp.T
    bpt = np.tile(bp, W).reshape(1, W * C2)

    # fc (GAP is applied in-kernel by summing rows and scaling by 1/(H*W)).
    wfct = np.tile(wf.T, (W, 1))                             # (W*C2, NCLS)
    bfc = bf.reshape(1, NCLS)

    return {
        "m1": jnp.asarray(m1, jnp.bfloat16),
        "b1t": jnp.asarray(b1t, jnp.float32),
        "mdw": jnp.asarray(mdw, jnp.bfloat16),
        "bdt": jnp.asarray(bdt, jnp.float32),
        "mpw": jnp.asarray(mpw, jnp.bfloat16),
        "bpt": jnp.asarray(bpt, jnp.float32),
        "wfct": jnp.asarray(wfct, jnp.bfloat16),
        "bfc": jnp.asarray(bfc, jnp.float32),
    }


# ----------------------------------------------------------------------------
# The profiled model + ProfileConv equivalent
# ----------------------------------------------------------------------------
def init_small_mobilenet(key):
    """Deterministic params. PyTorch shapes: Conv2d(4,8,3,p=1),
    Conv2d(8,8,3,p=1,groups=8), Conv2d(8,16,1), Linear(16,10)."""
    ks = jax.random.split(key, 8)
    p = {
        "conv1_w": 0.1 * jax.random.normal(ks[0], (8, 4, 3, 3), jnp.float32),
        "conv1_b": 0.1 * jax.random.normal(ks[1], (8,), jnp.float32),
        "dw_w":    0.1 * jax.random.normal(ks[2], (8, 1, 3, 3), jnp.float32),
        "dw_b":    0.1 * jax.random.normal(ks[3], (8,), jnp.float32),
        "pw_w":    0.1 * jax.random.normal(ks[4], (16, 8, 1, 1), jnp.float32),
        "pw_b":    0.1 * jax.random.normal(ks[5], (16,), jnp.float32),
        "fc_w":    0.1 * jax.random.normal(ks[6], (10, 16), jnp.float32),
        "fc_b":    0.1 * jax.random.normal(ks[7], (10,), jnp.float32),
    }
    return p


def ref_forward(params, x_nchw):
    """Pure-JAX (XLA) reference of the wrapped model, for numeric checking."""
    x = jnp.transpose(x_nchw, (0, 2, 3, 1)).astype(jnp.float32)   # NHWC
    N, H, W, _ = x.shape
    w1, b1 = params["conv1_w"], params["conv1_b"]
    xp = jnp.pad(x, ((0, 0), (1, 1), (1, 1), (0, 0)))
    y = jnp.zeros((N, H, W, w1.shape[0]), jnp.float32)
    for kh in range(3):
        for kw in range(3):
            y = y + jnp.einsum("nhwc,oc->nhwo",
                               xp[:, kh:kh + H, kw:kw + W, :], w1[:, :, kh, kw])
    y = jax.nn.relu(y + b1)
    wd, bd = params["dw_w"], params["dw_b"]
    yp = jnp.pad(y, ((0, 0), (1, 1), (1, 1), (0, 0)))
    z = jnp.zeros_like(y)
    for kh in range(3):
        for kw in range(3):
            z = z + yp[:, kh:kh + H, kw:kw + W, :] * wd[:, 0, kh, kw]
    z = jax.nn.relu(z + bd)
    wp, bp = params["pw_w"][:, :, 0, 0], params["pw_b"]
    u = jax.nn.relu(jnp.einsum("nhwc,oc->nhwo", z, wp) + bp)
    g = jnp.mean(u, axis=(1, 2))
    return g @ params["fc_w"].T + params["fc_b"]


class ProfileConvPallas:
    """JAX/Pallas equivalent of ProfileConv: forward(x) runs the wrapped model
    (the whole conv / linear chain as ONE fused Pallas kernel) and returns the
    MACs list computed with the same formulas as the PyTorch forward hooks."""

    def __init__(self, params):
        self.params = params
        self.macs = []
        self._ops_cache = {}
        self._jit_forward = jax.jit(fused_forward)

    def _get_ops(self, W):
        if W not in self._ops_cache:
            self._ops_cache[W] = _build_fused_operands(self.params, W)
        return self._ops_cache[W]

    def run_model(self, x_nchw):
        """Runs the wrapped model via the fused Pallas kernel; returns logits."""
        _, _, _, W = x_nchw.shape
        return self._jit_forward(x_nchw, self._get_ops(W))

    def forward(self, x_nchw):
        p = self.params
        N, CIN, H, W = x_nchw.shape

        logits = self.run_model(x_nchw)
        jax.block_until_ready(logits)   # model output itself is discarded

        # Same formulas (and same `/` true-division) as the PyTorch hooks.
        macs = []
        cout1, k1 = p["conv1_w"].shape[0], p["conv1_w"].shape[-1]
        macs.append(cout1 * H * W * k1 * k1 * CIN / 1)               # conv1
        c2, k2 = p["dw_w"].shape[0], p["dw_w"].shape[-1]
        macs.append(c2 * H * W * k2 * k2 * c2 / c2)                  # depthwise
        cout3, cin3, k3 = (p["pw_w"].shape[0], p["pw_w"].shape[1],
                           p["pw_w"].shape[-1])
        macs.append(cout3 * H * W * k3 * k3 * cin3 / 1)              # pointwise
        macs.append(p["fc_w"].shape[0] * p["fc_w"].shape[1])         # linear

        self.macs = macs
        return macs


if __name__ == "__main__":
    key = jax.random.PRNGKey(0)
    pkey, xkey = jax.random.split(key)
    params = init_small_mobilenet(pkey)

    # PyTorch conv input layout: NCHW
    x = jax.random.normal(xkey, (2, 4, 16, 16), jnp.float32)

    profiler = ProfileConvPallas(params)

    # Numeric check of the fused Pallas forward pass vs. a pure-JAX reference
    # (kernel uses bf16 MXU operands with f32 accumulation -> loose tolerance).
    pallas_logits = jax.block_until_ready(profiler.run_model(x))
    ref_logits = ref_forward(params, x)
    np.testing.assert_allclose(np.asarray(pallas_logits), np.asarray(ref_logits),
                               rtol=5e-2, atol=5e-2)

    macs = profiler.forward(x)

    # Same values the PyTorch hooks would record for this model at 2x4x16x16:
    expected = [8 * 16 * 16 * 3 * 3 * 4 / 1,      # conv1
                8 * 16 * 16 * 3 * 3 * 8 / 8,      # depthwise conv
                16 * 16 * 16 * 1 * 1 * 8 / 1,     # pointwise conv
                10 * 16]                          # linear
    assert macs == expected, (macs, expected)

    print("KERNEL_OK")
</pallas_src>

<mosaic_0001>
module attributes {stable_mosaic.version = 11 : i64} {
  func.func @_fused_mobilenet_kernel(%arg0: i32, %arg1: memref<1x18x72xf32, #tpu.memory_space<vmem>>, %arg2: memref<3x72x144xbf16, #tpu.memory_space<vmem>>, %arg3: memref<1x144xf32, #tpu.memory_space<vmem>>, %arg4: memref<3x144x128xbf16, #tpu.memory_space<vmem>>, %arg5: memref<1x128xf32, #tpu.memory_space<vmem>>, %arg6: memref<128x256xbf16, #tpu.memory_space<vmem>>, %arg7: memref<1x256xf32, #tpu.memory_space<vmem>>, %arg8: memref<256x10xbf16, #tpu.memory_space<vmem>>, %arg9: memref<1x10xf32, #tpu.memory_space<vmem>>, %arg10: memref<1x1x10xf32, #tpu.memory_space<vmem>>, %arg11: memref<18x144xf32, #tpu.memory_space<vmem>>) attributes {dimension_semantics = [#tpu.dimension_semantics<parallel>], iteration_bounds = array<i64: 2>, scalar_prefetch = 0 : i64, scratch_operands = 1 : i64, tpu.core_type = #tpu.core_type<tc>, window_params = [{transform_indices = @transform_0, window_bounds = array<i64: 1, 18, 72>}, {pipeline_mode = #tpu.pipeline_mode<synchronous>, transform_indices = @transform_1, window_bounds = array<i64: 3, 72, 144>}, {pipeline_mode = #tpu.pipeline_mode<synchronous>, transform_indices = @transform_2, window_bounds = array<i64: 1, 144>}, {pipeline_mode = #tpu.pipeline_mode<synchronous>, transform_indices = @transform_3, window_bounds = array<i64: 3, 144, 128>}, {pipeline_mode = #tpu.pipeline_mode<synchronous>, transform_indices = @transform_4, window_bounds = array<i64: 1, 128>}, {pipeline_mode = #tpu.pipeline_mode<synchronous>, transform_indices = @transform_5, window_bounds = array<i64: 128, 256>}, {pipeline_mode = #tpu.pipeline_mode<synchronous>, transform_indices = @transform_6, window_bounds = array<i64: 1, 256>}, {pipeline_mode = #tpu.pipeline_mode<synchronous>, transform_indices = @transform_7, window_bounds = array<i64: 256, 10>}, {pipeline_mode = #tpu.pipeline_mode<synchronous>, transform_indices = @transform_8, window_bounds = array<i64: 1, 10>}, {transform_indices = @transform_9, window_bounds = array<i64: 1, 1, 10>}]} {
    %c0 = arith.constant 0 : index
    %c0_0 = arith.constant 0 : index
    %c0_1 = arith.constant 0 : index
    %0 = vector.load %arg1[%c0, %c0_0, %c0_1] : memref<1x18x72xf32, #tpu.memory_space<vmem>>, vector<1x18x72xf32>
    %1 = vector.shape_cast %0 : vector<1x18x72xf32> to vector<18x72xf32>
    %cst = arith.constant 0.000000e+00 : f32
    %2 = vector.broadcast %cst : f32 to vector<16x144xf32>
    %3 = vector.extract_strided_slice %1 {offsets = [0, 0], sizes = [16, 72], strides = [1, 1]} : vector<18x72xf32> to vector<16x72xf32>
    %4 = arith.truncf %3 : vector<16x72xf32> to vector<16x72xbf16>
    %c0_2 = arith.constant 0 : index
    %c0_3 = arith.constant 0 : index
    %c0_4 = arith.constant 0 : index
    %5 = vector.load %arg2[%c0_2, %c0_3, %c0_4] : memref<3x72x144xbf16, #tpu.memory_space<vmem>>, vector<1x72x144xbf16>
    %6 = vector.shape_cast %5 : vector<1x72x144xbf16> to vector<72x144xbf16>
    %cst_5 = arith.constant dense<0.000000e+00> : vector<16x144xf32>
    %7 = tpu.matmul %4, %6, %cst_5 {dimension_numbers = #tpu.dot_dimension_numbers<[1], [0], [0], [1], [0, 0, 1, 1], [], []>} : vector<16x72xbf16>, vector<72x144xbf16>, vector<16x144xf32> -> vector<16x144xf32>
    %8 = arith.addf %2, %7 : vector<16x144xf32>
    %9 = vector.extract_strided_slice %1 {offsets = [1, 0], sizes = [16, 72], strides = [1, 1]} : vector<18x72xf32> to vector<16x72xf32>
    %10 = arith.truncf %9 : vector<16x72xf32> to vector<16x72xbf16>
    %c1 = arith.constant 1 : index
    %c0_6 = arith.constant 0 : index
    %c0_7 = arith.constant 0 : index
    %11 = vector.load %arg2[%c1, %c0_6, %c0_7] : memref<3x72x144xbf16, #tpu.memory_space<vmem>>, vector<1x72x144xbf16>
    %12 = vector.shape_cast %11 : vector<1x72x144xbf16> to vector<72x144xbf16>
    %cst_8 = arith.constant dense<0.000000e+00> : vector<16x144xf32>
    %13 = tpu.matmul %10, %12, %cst_8 {dimension_numbers = #tpu.dot_dimension_numbers<[1], [0], [0], [1], [0, 0, 1, 1], [], []>} : vector<16x72xbf16>, vector<72x144xbf16>, vector<16x144xf32> -> vector<16x144xf32>
    %14 = arith.addf %8, %13 : vector<16x144xf32>
    %15 = vector.extract_strided_slice %1 {offsets = [2, 0], sizes = [16, 72], strides = [1, 1]} : vector<18x72xf32> to vector<16x72xf32>
    %16 = arith.truncf %15 : vector<16x72xf32> to vector<16x72xbf16>
    %c2 = arith.constant 2 : index
    %c0_9 = arith.constant 0 : index
    %c0_10 = arith.constant 0 : index
    %17 = vector.load %arg2[%c2, %c0_9, %c0_10] : memref<3x72x144xbf16, #tpu.memory_space<vmem>>, vector<1x72x144xbf16>
    %18 = vector.shape_cast %17 : vector<1x72x144xbf16> to vector<72x144xbf16>
    %cst_11 = arith.constant dense<0.000000e+00> : vector<16x144xf32>
    %19 = tpu.matmul %16, %18, %cst_11 {dimension_numbers = #tpu.dot_dimension_numbers<[1], [0], [0], [1], [0, 0, 1, 1], [], []>} : vector<16x72xbf16>, vector<72x144xbf16>, vector<16x144xf32> -> vector<16x144xf32>
    %20 = arith.addf %14, %19 : vector<16x144xf32>
    %c0_12 = arith.constant 0 : index
    %c0_13 = arith.constant 0 : index
    %21 = vector.load %arg3[%c0_12, %c0_13] : memref<1x144xf32, #tpu.memory_space<vmem>>, vector<1x144xf32>
    %22 = vector.broadcast %21 : vector<1x144xf32> to vector<16x144xf32>
    %23 = arith.addf %20, %22 : vector<16x144xf32>
    %cst_14 = arith.constant 0.000000e+00 : f32
    %24 = vector.broadcast %cst_14 : f32 to vector<16x144xf32>
    %25 = arith.maximumf %23, %24 : vector<16x144xf32>
    %cst_15 = arith.constant 0.000000e+00 : f32
    %26 = vector.broadcast %cst_15 : f32 to vector<1x144xf32>
    %c0_16 = arith.constant 0 : index
    %c0_17 = arith.constant 0 : index
    %27 = vector.load %arg11[%c0_16, %c0_17] : memref<18x144xf32, #tpu.memory_space<vmem>>, vector<1x144xf32>
    tpu.vector_store %arg11[%c0_16, %c0_17], %26 {strides = array<i32>} : memref<18x144xf32, #tpu.memory_space<vmem>>, vector<1x144xf32>,
    %c17 = arith.constant 17 : index
    %c0_18 = arith.constant 0 : index
    %28 = vector.load %arg11[%c17, %c0_18] : memref<18x144xf32, #tpu.memory_space<vmem>>, vector<1x144xf32>
    tpu.vector_store %arg11[%c17, %c0_18], %26 {strides = array<i32>} : memref<18x144xf32, #tpu.memory_space<vmem>>, vector<1x144xf32>,
    %c1_19 = arith.constant 1 : index
    %c0_20 = arith.constant 0 : index
    %29 = vector.load %arg11[%c1_19, %c0_20] : memref<18x144xf32, #tpu.memory_space<vmem>>, vector<16x144xf32>
    tpu.vector_store %arg11[%c1_19, %c0_20], %25 {strides = array<i32>} : memref<18x144xf32, #tpu.memory_space<vmem>>, vector<16x144xf32>,
    %cst_21 = arith.constant 0.000000e+00 : f32
    %30 = vector.broadcast %cst_21 : f32 to vector<16x128xf32>
    %c0_22 = arith.constant 0 : index
    %c0_23 = arith.constant 0 : index
    %31 = vector.load %arg11[%c0_22, %c0_23] : memref<18x144xf32, #tpu.memory_space<vmem>>, vector<16x144xf32>
    %32 = arith.truncf %31 : vector<16x144xf32> to vector<16x144xbf16>
    %c0_24 = arith.constant 0 : index
    %c0_25 = arith.constant 0 : index
    %c0_26 = arith.constant 0 : index
    %33 = vector.load %arg4[%c0_24, %c0_25, %c0_26] : memref<3x144x128xbf16, #tpu.memory_space<vmem>>, vector<1x144x128xbf16>
    %34 = vector.shape_cast %33 : vector<1x144x128xbf16> to vector<144x128xbf16>
    %cst_27 = arith.constant dense<0.000000e+00> : vector<16x128xf32>
    %35 = tpu.matmul %32, %34, %cst_27 {dimension_numbers = #tpu.dot_dimension_numbers<[1], [0], [0], [1], [0, 0, 1, 1], [], []>} : vector<16x144xbf16>, vector<144x128xbf16>, vector<16x128xf32> -> vector<16x128xf32>
    %36 = arith.addf %30, %35 : vector<16x128xf32>
    %c1_28 = arith.constant 1 : index
    %c0_29 = arith.constant 0 : index
    %37 = vector.load %arg11[%c1_28, %c0_29] : memref<18x144xf32, #tpu.memory_space<vmem>>, vector<16x144xf32>
    %38 = arith.truncf %37 : vector<16x144xf32> to vector<16x144xbf16>
    %c1_30 = arith.constant 1 : index
    %c0_31 = arith.constant 0 : index
    %c0_32 = arith.constant 0 : index
    %39 = vector.load %arg4[%c1_30, %c0_31, %c0_32] : memref<3x144x128xbf16, #tpu.memory_space<vmem>>, vector<1x144x128xbf16>
    %40 = vector.shape_cast %39 : vector<1x144x128xbf16> to vector<144x128xbf16>
    %cst_33 = arith.constant dense<0.000000e+00> : vector<16x128xf32>
    %41 = tpu.matmul %38, %40, %cst_33 {dimension_numbers = #tpu.dot_dimension_numbers<[1], [0], [0], [1], [0, 0, 1, 1], [], []>} : vector<16x144xbf16>, vector<144x128xbf16>, vector<16x128xf32> -> vector<16x128xf32>
    %42 = arith.addf %36, %41 : vector<16x128xf32>
    %c2_34 = arith.constant 2 : index
    %c0_35 = arith.constant 0 : index
    %43 = vector.load %arg11[%c2_34, %c0_35] : memref<18x144xf32, #tpu.memory_space<vmem>>, vector<16x144xf32>
    %44 = arith.truncf %43 : vector<16x144xf32> to vector<16x144xbf16>
    %c2_36 = arith.constant 2 : index
    %c0_37 = arith.constant 0 : index
    %c0_38 = arith.constant 0 : index
    %45 = vector.load %arg4[%c2_36, %c0_37, %c0_38] : memref<3x144x128xbf16, #tpu.memory_space<vmem>>, vector<1x144x128xbf16>
    %46 = vector.shape_cast %45 : vector<1x144x128xbf16> to vector<144x128xbf16>
    %cst_39 = arith.constant dense<0.000000e+00> : vector<16x128xf32>
    %47 = tpu.matmul %44, %46, %cst_39 {dimension_numbers = #tpu.dot_dimension_numbers<[1], [0], [0], [1], [0, 0, 1, 1], [], []>} : vector<16x144xbf16>, vector<144x128xbf16>, vector<16x128xf32> -> vector<16x128xf32>
    %48 = arith.addf %42, %47 : vector<16x128xf32>
    %c0_40 = arith.constant 0 : index
    %c0_41 = arith.constant 0 : index
    %49 = vector.load %arg5[%c0_40, %c0_41] : memref<1x128xf32, #tpu.memory_space<vmem>>, vector<1x128xf32>
    %50 = vector.broadcast %49 : vector<1x128xf32> to vector<16x128xf32>
    %51 = arith.addf %48, %50 : vector<16x128xf32>
    %cst_42 = arith.constant 0.000000e+00 : f32
    %52 = vector.broadcast %cst_42 : f32 to vector<16x128xf32>
    %53 = arith.maximumf %51, %52 : vector<16x128xf32>
    %54 = arith.truncf %53 : vector<16x128xf32> to vector<16x128xbf16>
    %c0_43 = arith.constant 0 : index
    %c0_44 = arith.constant 0 : index
    %55 = vector.load %arg6[%c0_43, %c0_44] : memref<128x256xbf16, #tpu.memory_space<vmem>>, vector<128x256xbf16>
    %cst_45 = arith.constant dense<0.000000e+00> : vector<16x256xf32>
    %56 = tpu.matmul %54, %55, %cst_45 {dimension_numbers = #tpu.dot_dimension_numbers<[1], [0], [0], [1], [0, 0, 1, 1], [], []>} : vector<16x128xbf16>, vector<128x256xbf16>, vector<16x256xf32> -> vector<16x256xf32>
    %c0_46 = arith.constant 0 : index
    %c0_47 = arith.constant 0 : index
    %57 = vector.load %arg7[%c0_46, %c0_47] : memref<1x256xf32, #tpu.memory_space<vmem>>, vector<1x256xf32>
    %58 = vector.broadcast %57 : vector<1x256xf32> to vector<16x256xf32>
    %59 = arith.addf %56, %58 : vector<16x256xf32>
    %cst_48 = arith.constant 0.000000e+00 : f32
    %60 = vector.broadcast %cst_48 : f32 to vector<16x256xf32>
    %61 = arith.maximumf %59, %60 : vector<16x256xf32>
    %62 = arith.truncf %61 : vector<16x256xf32> to vector<16x256xbf16>
    %c0_49 = arith.constant 0 : index
    %c0_50 = arith.constant 0 : index
    %63 = vector.load %arg8[%c0_49, %c0_50] : memref<256x10xbf16, #tpu.memory_space<vmem>>, vector<256x10xbf16>
    %cst_51 = arith.constant dense<0.000000e+00> : vector<16x10xf32>
    %64 = tpu.matmul %62, %63, %cst_51 {dimension_numbers = #tpu.dot_dimension_numbers<[1], [0], [0], [1], [0, 0, 1, 1], [], []>} : vector<16x256xbf16>, vector<256x10xbf16>, vector<16x10xf32> -> vector<16x10xf32>
    %cst_52 = arith.constant dense<0.000000e+00> : vector<10xf32>
    %65 = vector.multi_reduction <add>, %64, %cst_52 [0] : vector<16x10xf32> to vector<10xf32>
    %66 = vector.shape_cast %65 : vector<10xf32> to vector<1x10xf32>
    %cst_53 = arith.constant 3.906250e-03 : f32
    %67 = vector.broadcast %cst_53 : f32 to vector<1x10xf32>
    %68 = arith.mulf %66, %67 : vector<1x10xf32>
    %c0_54 = arith.constant 0 : index
    %c0_55 = arith.constant 0 : index
    %69 = vector.load %arg9[%c0_54, %c0_55] : memref<1x10xf32, #tpu.memory_space<vmem>>, vector<1x10xf32>
    %70 = arith.addf %68, %69 : vector<1x10xf32>
    %c0_56 = arith.constant 0 : index
    %c0_57 = arith.constant 0 : index
    %c0_58 = arith.constant 0 : index
    %71 = vector.load %arg10[%c0_56, %c0_57, %c0_58] : memref<1x1x10xf32, #tpu.memory_space<vmem>>, vector<1x1x10xf32>
    %72 = vector.shape_cast %71 : vector<1x1x10xf32> to vector<1x10xf32>
    %73 = vector.shape_cast %70 : vector<1x10xf32> to vector<1x1x10xf32>
    tpu.vector_store %arg10[%c0_56, %c0_57, %c0_58], %73 {strides = array<i32>} : memref<1x1x10xf32, #tpu.memory_space<vmem>>, vector<1x1x10xf32>,
    return
  }
  func.func @transform_0(%arg0: i32) -> (i32, i32, i32) {
    %c0_i32 = arith.constant 0 : i32
    %c0_i32_0 = arith.constant 0 : i32
    %c0_i32_1 = arith.constant 0 : i32
    return %arg0, %c0_i32, %c0_i32_0 : i32, i32, i32
  }
  func.func @transform_1(%arg0: i32) -> (i32, i32, i32) {
    %c0_i32 = arith.constant 0 : i32
    %c0_i32_0 = arith.constant 0 : i32
    %c0_i32_1 = arith.constant 0 : i32
    %c0_i32_2 = arith.constant 0 : i32
    return %c0_i32, %c0_i32_0, %c0_i32_1 : i32, i32, i32
  }
  func.func @transform_2(%arg0: i32) -> (i32, i32) {
    %c0_i32 = arith.constant 0 : i32
    %c0_i32_0 = arith.constant 0 : i32
    %c0_i32_1 = arith.constant 0 : i32
    return %c0_i32, %c0_i32_0 : i32, i32
  }
  func.func @transform_3(%arg0: i32) -> (i32, i32, i32) {
    %c0_i32 = arith.constant 0 : i32
    %c0_i32_0 = arith.constant 0 : i32
    %c0_i32_1 = arith.constant 0 : i32
    %c0_i32_2 = arith.constant 0 : i32
    return %c0_i32, %c0_i32_0, %c0_i32_1 : i32, i32, i32
  }
  func.func @transform_4(%arg0: i32) -> (i32, i32) {
    %c0_i32 = arith.constant 0 : i32
    %c0_i32_0 = arith.constant 0 : i32
    %c0_i32_1 = arith.constant 0 : i32
    return %c0_i32, %c0_i32_0 : i32, i32
  }
  func.func @transform_5(%arg0: i32) -> (i32, i32) {
    %c0_i32 = arith.constant 0 : i32
    %c0_i32_0 = arith.constant 0 : i32
    %c0_i32_1 = arith.constant 0 : i32
    return %c0_i32, %c0_i32_0 : i32, i32
  }
  func.func @transform_6(%arg0: i32) -> (i32, i32) {
    %c0_i32 = arith.constant 0 : i32
    %c0_i32_0 = arith.constant 0 : i32
    %c0_i32_1 = arith.constant 0 : i32
    return %c0_i32, %c0_i32_0 : i32, i32
  }
  func.func @transform_7(%arg0: i32) -> (i32, i32) {
    %c0_i32 = arith.constant 0 : i32
    %c0_i32_0 = arith.constant 0 : i32
    %c0_i32_1 = arith.constant 0 : i32
    return %c0_i32, %c0_i32_0 : i32, i32
  }
  func.func @transform_8(%arg0: i32) -> (i32, i32) {
    %c0_i32 = arith.constant 0 : i32
    %c0_i32_0 = arith.constant 0 : i32
    %c0_i32_1 = arith.constant 0 : i32
    return %c0_i32, %c0_i32_0 : i32, i32
  }
  func.func @transform_9(%arg0: i32) -> (i32, i32, i32) {
    %c0_i32 = arith.constant 0 : i32
    %c0_i32_0 = arith.constant 0 : i32
    %c0_i32_1 = arith.constant 0 : i32
    return %arg0, %c0_i32, %c0_i32_0 : i32, i32, i32
  }
}

</mosaic_0001>

<llo_original>
// kernel: fused_forward.1
$region0: #{fused_forward.1}
  #allocation0 [shape = 'u32[]', space=smem, size = 0x4, offset = 0x4, fixed_abs, tag = 'smem constant byte address 0x4 - core index']
  #allocation1 [shape = 'u32[144,128]{1,0:T(1,128)}', space=vmem, size = 0x12000, scoped, tag = 'internal scratch']
  #allocation2 [shape = 'f32[18,144]{1,0:T(8,128)}', space=vmem, size = 0x6000, scoped, tag = 'scratch operand']
  %s0 = inlined_call_operand.vmem [shape: f32[2,18,72], index: 0, kind: input, shape index: {}]
  %s1 = inlined_call_operand.vmem [shape: bf16[3,72,144], index: 1, kind: input, shape index: {}]
  %s2 = inlined_call_operand.vmem [shape: f32[1,144], index: 2, kind: input, shape index: {}]
  %s3 = inlined_call_operand.vmem [shape: bf16[3,144,128], index: 3, kind: input, shape index: {}]
  %s4 = inlined_call_operand.vmem [shape: f32[1,128], index: 4, kind: input, shape index: {}]
  %s5 = inlined_call_operand.vmem [shape: bf16[128,256], index: 5, kind: input, shape index: {}]
  %s6 = inlined_call_operand.vmem [shape: f32[1,256], index: 6, kind: input, shape index: {}]
  %s7 = inlined_call_operand.vmem [shape: bf16[256,10], index: 7, kind: input, shape index: {}]
  %s8 = inlined_call_operand.vmem [shape: f32[1,10], index: 8, kind: input, shape index: {}]
  %s9 = inlined_call_operand.hbm [shape: f32[2,1,10], index: 9, kind: output, shape index: {}]
  %s10 = sld [smem:[#allocation0]]
  $region69: #{fused_forward.1} parent=0
    _
  %s12 = ssub.s32 1, %s10
  %s13 = scalar_select 0, %s12, %s10
  $region1: #{fused_forward.1} parent=0
    #allocation3 [shape = 'u8[1024]{0}', space=vmem, size = 0x400, scoped, tag = 'output window, operand 0']
    #allocation4 [shape = 's32[2]{0}', space=sflag, size = 0x8, scoped, tag = 'scoped memory for fused_forward.1']
    %14 = vsyncpa [#allocation4], 0
    %s15 = scalar_lea.sflag [#allocation4], 1
    %16 = vsyncpa %s15, 0
    loop: start=0, step=1, limit=4
    $region2: #{fused_forward.1} parent=1 // loop_pre_header
      _
    $region3: #{fused_forward.1} parent=1 // loop_header
      %s18 = sphi 0, %s22
      %p19 = scmp.ge.s32.totalorder %s18, 4
      %s28 = sphi 0, %s30
      %s31 = sphi 0, %s28
      %s32 = sphi 0, %s31
      %s48 = sphi 0, %s32
      %s52 = sphi 0, %s52
      %s54 = sphi 0, %s52
      %s55 = sphi 0, %s54
      %s69 = sphi 0, %s55
      %s73 = sphi 0, %s73
      %s75 = sphi 0, %s73
      %s76 = sphi 0, %s75
      %s90 = sphi 0, %s76
      %s94 = sphi 0, %s94
      %s96 = sphi 0, %s94
      %s97 = sphi 0, %s96
      %s111 = sphi 0, %s97
      %s115 = sphi 0, %s115
      %s117 = sphi 0, %s115
      %s118 = sphi 0, %s117
      %s132 = sphi 0, %s118
      %s136 = sphi 0, %s136
      %s138 = sphi 0, %s136
      %s139 = sphi 0, %s138
      %s153 = sphi 0, %s139
      %s157 = sphi 0, %s157
      %s159 = sphi 0, %s157
      %s160 = sphi 0, %s159
      %s174 = sphi 0, %s160
      %s178 = sphi 0, %s178
      %s180 = sphi 0, %s178
      %s181 = sphi 0, %s180
      %s195 = sphi 0, %s181
      %s199 = sphi 0, %s199
      %s201 = sphi 0, %s199
      %s202 = sphi 0, %s201
      %s216 = sphi 0, %s202
      %s222 = sphi 0, %s224
      %s225 = sphi 0, %s222
      %s226 = sphi 0, %s225
      %s242 = sphi 0, %s226
    $region4: #{fused_forward.1} parent=1 // loop_header_branch
      %21 = sbr.rel (%p19) target = $region8
    $region5: #{fused_forward.1} parent=1 // loop_body
      %s23 = ssub.s32 %s18, 1
      %s24 = ssub.s32 %s18, 2
      %s25 = sadd.s32 %s18, 1
      %s26 = ssub.s32 %s18, %s25
      %p27 = scmp.eq.s32.totalorder %s26, 0
      %s29 = sadd.s32 %s28, 1
      %s30 = scalar_select %p27, %s28, %s29
      %p33 = pneg %p27
      %p34 = scmp.eq.s32.totalorder %s18, 1
      %p35 = por %p33, %p34
      %p36 = scmp.ne.s32.totalorder %s28, %s31
      %p37 = scmp.eq.s32.totalorder %s18, 0
      %p38 = por %p36, %p37
      %p39 = scmp.ne.s32.totalorder %s28, %s31
      %p40 = scmp.eq.s32.totalorder %s23, 1
      %p41 = por %p39, %p40
      %p42 = scmp.ne.s32.totalorder %s31, %s32
      %p43 = scmp.eq.s32.totalorder %s23, 0
      %p44 = por %p42, %p43
      %p45 = scmp.ne.s32.totalorder %s31, %s32
      %p46 = scmp.eq.s32.totalorder %s24, 1
      %p47 = por %p45, %p46
      %p49 = scmp.ne.s32.totalorder %s32, %s48
      %p50 = scmp.eq.s32.totalorder %s24, 0
      %p51 = por %p49, %p50
      %s53 = sadd.s32 %s52, 1
      %p56 = scmp.eq.s32.totalorder %s18, 1
      %p57 = scmp.ne.s32.totalorder %s52, %s54
      %p58 = scmp.eq.s32.totalorder %s18, 0
      %p59 = por %p57, %p58
      %p60 = scmp.ne.s32.totalorder %s52, %s54
      %p61 = scmp.eq.s32.totalorder %s23, 1
      %p62 = por %p60, %p61
      %p63 = scmp.ne.s32.totalorder %s54, %s55
      %p64 = scmp.eq.s32.totalorder %s23, 0
      %p65 = por %p63, %p64
      %p66 = scmp.ne.s32.totalorder %s54, %s55
      %p67 = scmp.eq.s32.totalorder %s24, 1
      %p68 = por %p66, %p67
      %p70 = scmp.ne.s32.totalorder %s55, %s69
      %p71 = scmp.eq.s32.totalorder %s24, 0
      %p72 = por %p70, %p71
      %s74 = sadd.s32 %s73, 1
      %p77 = scmp.eq.s32.totalorder %s18, 1
      %p78 = scmp.ne.s32.totalorder %s73, %s75
      %p79 = scmp.eq.s32.totalorder %s18, 0
      %p80 = por %p78, %p79
      %p81 = scmp.ne.s32.totalorder %s73, %s75
      %p82 = scmp.eq.s32.totalorder %s23, 1
      %p83 = por %p81, %p82
      %p84 = scmp.ne.s32.totalorder %s75, %s76
      %p85 = scmp.eq.s32.totalorder %s23, 0
      %p86 = por %p84, %p85
      %p87 = scmp.ne.s32.totalorder %s75, %s76
      %p88 = scmp.eq.s32.totalorder %s24, 1
      %p89 = por %p87, %p88
      %p91 = scmp.ne.s32.totalorder %s76, %s90
      %p92 = scmp.eq.s32.totalorder %s24, 0
      %p93 = por %p91, %p92
      %s95 = sadd.s32 %s94, 1
      %p98 = scmp.eq.s32.totalorder %s18, 1
      %p99 = scmp.ne.s32.totalorder %s94, %s96
      %p100 = scmp.eq.s32.totalorder %s18, 0
      %p101 = por %p99, %p100
      %p102 = scmp.ne.s32.totalorder %s94, %s96
      %p103 = scmp.eq.s32.totalorder %s23, 1
      %p104 = por %p102, %p103
      %p105 = scmp.ne.s32.totalorder %s96, %s97
      %p106 = scmp.eq.s32.totalorder %s23, 0
      %p107 = por %p105, %p106
      %p108 = scmp.ne.s32.totalorder %s96, %s97
      %p109 = scmp.eq.s32.totalorder %s24, 1
      %p110 = por %p108, %p109
      %p112 = scmp.ne.s32.totalorder %s97, %s111
      %p113 = scmp.eq.s32.totalorder %s24, 0
      %p114 = por %p112, %p113
      %s116 = sadd.s32 %s115, 1
      %p119 = scmp.eq.s32.totalorder %s18, 1
      %p120 = scmp.ne.s32.totalorder %s115, %s117
      %p121 = scmp.eq.s32.totalorder %s18, 0
      %p122 = por %p120, %p121
      %p123 = scmp.ne.s32.totalorder %s115, %s117
      %p124 = scmp.eq.s32.totalorder %s23, 1
      %p125 = por %p123, %p124
      %p126 = scmp.ne.s32.totalorder %s117, %s118
      %p127 = scmp.eq.s32.totalorder %s23, 0
      %p128 = por %p126, %p127
      %p129 = scmp.ne.s32.totalorder %s117, %s118
      %p130 = scmp.eq.s32.totalorder %s24, 1
      %p131 = por %p129, %p130
      %p133 = scmp.ne.s32.totalorder %s118, %s132
      %p134 = scmp.eq.s32.totalorder %s24, 0
      %p135 = por %p133, %p134
      %s137 = sadd.s32 %s136, 1
      %p140 = scmp.eq.s32.totalorder %s18, 1
      %p141 = scmp.ne.s32.totalorder %s136, %s138
      %p142 = scmp.eq.s32.totalorder %s18, 0
      %p143 = por %p141, %p142
      %p144 = scmp.ne.s32.totalorder %s136, %s138
      %p145 = scmp.eq.s32.totalorder %s23, 1
      %p146 = por %p144, %p145
      %p147 = scmp.ne.s32.totalorder %s138, %s139
      %p148 = scmp.eq.s32.totalorder %s23, 0
      %p149 = por %p147, %p148
      %p150 = scmp.ne.s32.totalorder %s138, %s139
      %p151 = scmp.eq.s32.totalorder %s24, 1
      %p152 = por %p150, %p151
      %p154 = scmp.ne.s32.totalorder %s139, %s153
      %p155 = scmp.eq.s32.totalorder %s24, 0
      %p156 = por %p154, %p155
      %s158 = sadd.s32 %s157, 1
      %p161 = scmp.eq.s32.totalorder %s18, 1
      %p162 = scmp.ne.s32.totalorder %s157, %s159
      %p163 = scmp.eq.s32.totalorder %s18, 0
      %p164 = por %p162, %p163
      %p165 = scmp.ne.s32.totalorder %s157, %s159
      %p166 = scmp.eq.s32.totalorder %s23, 1
      %p167 = por %p165, %p166
      %p168 = scmp.ne.s32.totalorder %s159, %s160
      %p169 = scmp.eq.s32.totalorder %s23, 0
      %p170 = por %p168, %p169
      %p171 = scmp.ne.s32.totalorder %s159, %s160
      %p172 = scmp.eq.s32.totalorder %s24, 1
      %p173 = por %p171, %p172
      %p175 = scmp.ne.s32.totalorder %s160, %s174
      %p176 = scmp.eq.s32.totalorder %s24, 0
      %p177 = por %p175, %p176
      %s179 = sadd.s32 %s178, 1
      %p182 = scmp.eq.s32.totalorder %s18, 1
      %p183 = scmp.ne.s32.totalorder %s178, %s180
      %p184 = scmp.eq.s32.totalorder %s18, 0
      %p185 = por %p183, %p184
      %p186 = scmp.ne.s32.totalorder %s178, %s180
      %p187 = scmp.eq.s32.totalorder %s23, 1
      %p188 = por %p186, %p187
      %p189 = scmp.ne.s32.totalorder %s180, %s181
      %p190 = scmp.eq.s32.totalorder %s23, 0
      %p191 = por %p189, %p190
      %p192 = scmp.ne.s32.totalorder %s180, %s181
      %p193 = scmp.eq.s32.totalorder %s24, 1
      %p194 = por %p192, %p193
      %p196 = scmp.ne.s32.totalorder %s181, %s195
      %p197 = scmp.eq.s32.totalorder %s24, 0
      %p198 = por %p196, %p197
      %s200 = sadd.s32 %s199, 1
      %p203 = scmp.eq.s32.totalorder %s18, 1
      %p204 = scmp.ne.s32.totalorder %s199, %s201
      %p205 = scmp.eq.s32.totalorder %s18, 0
      %p206 = por %p204, %p205
      %p207 = scmp.ne.s32.totalorder %s199, %s201
      %p208 = scmp.eq.s32.totalorder %s23, 1
      %p209 = por %p207, %p208
      %p210 = scmp.ne.s32.totalorder %s201, %s202
      %p211 = scmp.eq.s32.totalorder %s23, 0
      %p212 = por %p210, %p211
      %p213 = scmp.ne.s32.totalorder %s201, %s202
      %p214 = scmp.eq.s32.totalorder %s24, 1
      %p215 = por %p213, %p214
      %p217 = scmp.ne.s32.totalorder %s202, %s216
      %p218 = scmp.eq.s32.totalorder %s24, 0
      %p219 = por %p217, %p218
      %s220 = ssub.s32 %s18, %s25
      %p221 = scmp.eq.s32.totalorder %s220, 0
      %s223 = sadd.s32 %s222, 1
      %s224 = scalar_select %p221, %s222, %s223
      %p227 = pneg %p221
      %p228 = scmp.eq.s32.totalorder %s18, 1
      %p229 = por %p227, %p228
      %p230 = scmp.ne.s32.totalorder %s222, %s225
      %p231 = scmp.eq.s32.totalorder %s18, 0
      %p232 = por %p230, %p231
      %p233 = scmp.ne.s32.totalorder %s222, %s225
      %p234 = scmp.eq.s32.totalorder %s23, 1
      %p235 = por %p233, %p234
      %p236 = scmp.ne.s32.totalorder %s225, %s226
      %p237 = scmp.eq.s32.totalorder %s23, 0
      %p238 = por %p236, %p237
      %p239 = scmp.ne.s32.totalorder %s225, %s226
      %p240 = scmp.eq.s32.totalorder %s24, 1
      %p241 = por %p239, %p240
      %p243 = scmp.ne.s32.totalorder %s226, %s242
      %p244 = scmp.eq.s32.totalorder %s24, 0
      %p245 = por %p243, %p244
      %p246 = scmp.le.s32.totalorder 1, %s18
      %p247 = scmp.lt.s32.totalorder %s18, 3
      %p248 = pnand %p246, %p247
      %p249 = pneg %p248
      // Predicated region
      $region9: #{fused_forward.1} parent=5 // pred_check
        _
      $region10: #{fused_forward.1} parent=5 // pred_check_branch
        %251 = sbr.rel (%p248) target = $region12
      $region11: #{fused_forward.1} parent=5 // pred_region
        %s252 = ssub.s32 %s18, 1
        // Predicated region
        $region13: #{fused_forward.1} parent=11 // pred_check
          %p253 = pneg %p65
        $region14: #{fused_forward.1} parent=11 // pred_check_branch
          %255 = sbr.rel (%p253) target = $region16
        $region15: #{fused_forward.1} parent=11 // pred_region
          _
        $region16: #{fused_forward.1} parent=11 // pred_fallthru
          _
        // Predicated region
        $region17: #{fused_forward.1} parent=11 // pred_check
          %p256 = pneg %p86
        $region18: #{fused_forward.1} parent=11 // pred_check_branch
          %258 = sbr.rel (%p256) target = $region20
        $region19: #{fused_forward.1} parent=11 // pred_region
          _
        $region20: #{fused_forward.1} parent=11 // pred_fallthru
          _
        // Predicated region
        $region21: #{fused_forward.1} parent=11 // pred_check
          %p259 = pneg %p107
        $region22: #{fused_forward.1} parent=11 // pred_check_branch
          %261 = sbr.rel (%p259) target = $region24
        $region23: #{fused_forward.1} parent=11 // pred_region
          _
        $region24: #{fused_forward.1} parent=11 // pred_fallthru
          _
        // Predicated region
        $region25: #{fused_forward.1} parent=11 // pred_check
          %p262 = pneg %p128
        $region26: #{fused_forward.1} parent=11 // pred_check_branch
          %264 = sbr.rel (%p262) target = $region28
        $region27: #{fused_forward.1} parent=11 // pred_region
          _
        $region28: #{fused_forward.1} parent=11 // pred_fallthru
          _
        // Predicated region
        $region29: #{fused_forward.1} parent=11 // pred_check
          %p265 = pneg %p149
        $region30: #{fused_forward.1} parent=11 // pred_check_branch
          %267 = sbr.rel (%p265) target = $region32
        $region31: #{fused_forward.1} parent=11 // pred_region
          _
        $region32: #{fused_forward.1} parent=11 // pred_fallthru
          _
        // Predicated region
        $region33: #{fused_forward.1} parent=11 // pred_check
          %p268 = pneg %p170
        $region34: #{fused_forward.1} parent=11 // pred_check_branch
          %270 = sbr.rel (%p268) target = $region36
        $region35: #{fused_forward.1} parent=11 // pred_region
          _
        $region36: #{fused_forward.1} parent=11 // pred_fallthru
          _
        // Predicated region
        $region37: #{fused_forward.1} parent=11 // pred_check
          %p271 = pneg %p191
        $region38: #{fused_forward.1} parent=11 // pred_check_branch
          %273 = sbr.rel (%p271) target = $region40
        $region39: #{fused_forward.1} parent=11 // pred_region
          _
        $region40: #{fused_forward.1} parent=11 // pred_fallthru
          _
        // Predicated region
        $region41: #{fused_forward.1} parent=11 // pred_check
          %p274 = pneg %p212
        $region42: #{fused_forward.1} parent=11 // pred_check_branch
          %276 = sbr.rel (%p274) target = $region44
        $region43: #{fused_forward.1} parent=11 // pred_region
          _
        $region44: #{fused_forward.1} parent=11 // pred_fallthru
          _
      $region12: #{fused_forward.1} parent=5 // pred_fallthru
        _
      %p277 = scmp.lt.s32.totalorder %s18, 2
      // Predicated region
      $region45: #{fused_forward.1} parent=5 // pred_check
        %p278 = pneg %p277
      $region46: #{fused_forward.1} parent=5 // pred_check_branch
        %280 = sbr.rel (%p278) target = $region48
      $region47: #{fused_forward.1} parent=5 // pred_region
        // Predicated region
        $region49: #{fused_forward.1} parent=47 // pred_check
          %p281 = pneg %p38
        $region50: #{fused_forward.1} parent=47 // pred_check_branch
          %283 = sbr.rel (%p281) target = $region52
        $region51: #{fused_forward.1} parent=47 // pred_region
          %p284 = scmp.lt.s32.totalorder %s18, 1
          %s285 = scalar_select %p284, %s18, 1
          %s286 = smul.addr %s285, 3
          %s287 = smul.addr %s286, 8
          %s288 = scalar_lea.vmem %s0, %s287
        $region52: #{fused_forward.1} parent=47 // pred_fallthru
          _
      $region48: #{fused_forward.1} parent=5 // pred_fallthru
        _
      %p289 = scmp.le.s32.totalorder 1, %s18
      %p290 = scmp.lt.s32.totalorder %s18, 3
      %p291 = pnand %p289, %p290
      %p292 = pneg %p291
      // Predicated region
      $region53: #{fused_forward.1} parent=5 // pred_check
        _
      $region54: #{fused_forward.1} parent=5 // pred_check_branch
        %294 = sbr.rel (%p291) target = $region56
      $region55: #{fused_forward.1} parent=5 // pred_region
        %s295 = ssub.s32 %s18, 1
        %p296 = scmp.lt.s32.totalorder %s23, 1
        %s297 = scalar_select %p296, %s23, 1
        %s298 = smul.addr %s297, 3
        %s299 = smul.addr %s298, 8
        %s300 = scalar_lea.vmem %s0, %s299
        %p301 = pneg %p44
        %p302 = pneg %p41
        %p303 = pneg %p65
        %p304 = pneg %p62
        %p305 = pneg %p86
        %p306 = pneg %p83
        %p307 = pneg %p107
        %p308 = pneg %p104
        %p309 = pneg %p128
        %p310 = pneg %p125
        %p311 = pneg %p149
        %p312 = pneg %p146
        %p313 = pneg %p170
        %p314 = pneg %p167
        %p315 = pneg %p191
        %p316 = pneg %p188
        %p317 = pneg %p212
        %p318 = pneg %p209
        %p319 = pneg %p238
        %p320 = pneg %p235
        %s321 = sand.u32 %s225, 1
        %s322 = scalar_lea.sflag [#allocation4], %s321
        %s323 = sand.u32 %s225, 1
        %s324 = scalar_lea.vmem [#allocation3], %s323
        %p325 = scmp.lt.s32.totalorder %s23, 1
        %s326 = scalar_select %p325, %s23, 1
        %s327 = smul.addr %s326, 3
        %s328 = smul.addr %s327, 8
        %s329 = scalar_lea.vmem %s0, %s328
        %v331 = vld [vmem:[%s329] sm:$0xff]
        %v332 = vld [vmem:[%s329 + $0x8] sm:$0xff]
        %v333 = vld [vmem:[%s329 + $0x10] sm:$0x3]
        %v334 = vpack.c.bf16 %v332, %v331
        %v335 = vld [vmem:[%s1] sm:$0xff]
        %v336 = vld [vmem:[%s1 + $0x8] sm:$0xff]
        %v337 = vld [vmem:[%s1 + $0x10] sm:$0xff]
        %v338 = vld [vmem:[%s1 + $0x18] sm:$0xff]
        %v339 = vld [vmem:[%s1 + $0x20] sm:$0xff]
        %v340 = vld [vmem:[%s1 + $0x28] sm:$0xff]
        %v341 = vld [vmem:[%s1 + $0x30] sm:$0xff]
        %v342 = vld [vmem:[%s1 + $0x38] sm:$0xff]
        %v343 = vld [vmem:[%s1 + $0x40] sm:$0xff]
        %v344 = vpack.c.bf16 %v333, %v333
        %s345 = scalar_lea.vmem %s1, 72
        %v346 = vld [vmem:[%s345] sm:$0xff]
        %v347 = vld [vmem:[%s345 + $0x8] sm:$0xff]
        %v348 = vld [vmem:[%s345 + $0x10] sm:$0xff]
        %v349 = vld [vmem:[%s345 + $0x18] sm:$0xff]
        %v350 = vld [vmem:[%s345 + $0x20] sm:$0xff]
        %v351 = vld [vmem:[%s345 + $0x28] sm:$0xff]
        %v352 = vld [vmem:[%s345 + $0x30] sm:$0xff]
        %v353 = vld [vmem:[%s345 + $0x38] sm:$0xff]
        %v354 = vld [vmem:[%s345 + $0x40] sm:$0xff]
        %vm355 = vsmask.f32 7424
        %v357 = vshrl.u32 %v334, 16
        %v359 = vshll.u32 %v334, 16
        %v361 = vrot.slane %v359, 1
        %v362 = vor.u32 %v357, %v361
        %v364 = vshll.u32 %v344, 16
        %v366 = vrot.slane %v364, 1
        %v367 = vsel %vm355, %v362, %v366
        %v377 = vunpack.c.l.b16 %v346
        %v378 = vunpack.c.h.b16 %v346
        %v379 = vunpack.c.l.b16 %v347
        %v380 = vunpack.c.h.b16 %v347
        %v381 = vunpack.c.l.b16 %v348
        %v382 = vunpack.c.h.b16 %v348
        %v383 = vunpack.c.l.b16 %v349
        %v384 = vunpack.c.h.b16 %v349
        %v385 = vunpack.c.l.b16 %v350
        %v386 = vunpack.c.h.b16 %v350
        %v387 = vunpack.c.l.b16 %v351
        %v388 = vunpack.c.h.b16 %v351
        %v389 = vunpack.c.l.b16 %v352
        %v390 = vunpack.c.h.b16 %v352
        %v391 = vunpack.c.l.b16 %v353
        %v392 = vunpack.c.h.b16 %v353
        %v393 = vunpack.c.l.b16 %v354
        %v394 = vunpack.c.h.b16 %v354
        %v395 = vpack.c.b16 %v379, %v377
        %v396 = vpack.c.b16 %v380, %v378
        %v397 = vpack.c.b16 %v383, %v381
        %v398 = vpack.c.b16 %v384, %v382
        %v399 = vpack.c.b16 %v387, %v385
        %v400 = vpack.c.b16 %v388, %v386
        %v401 = vpack.c.b16 %v391, %v389
        %v402 = vpack.c.b16 %v392, %v390
        %v403 = vpack.c.b16 %v393, %v393
        %v404 = vpack.c.b16 %v394, %v394
        %vm413 = vcmask 588800
        %v415 = vsel %vm413, %v367, 0
        %vm417 = vcmask 1043456
        %v419 = vsel %vm417, %v403, 0
        %v422 = vsel %vm417, %v404, 0
        %424 = vmatprep.subr.bf16.mxu0 %v396
        %425 = vmatpush1.bf16.msra.mxu0 %v395
        %426 = vmatprep.subr.bf16.mxu0 %v398
        %427 = vmatpush1.bf16.msra.mxu0 %v397
        %428 = vmatprep.subr.bf16.mxu0 %v400
        %429 = vmatpush1.bf16.msra.mxu0 %v399
        %430 = vmatprep.subr.bf16.mxu0 %v402
        %431 = vmatpush1.bf16.msra.mxu0 %v401
        %432 = vmatprep.subr.bf16.mxu0 %v422
        %433 = vmatpush1.bf16.msra.mxu0 %v419
        %434 = vmatprep.subr.bf16.mxu0 0
        %435 = vmatpush1.bf16.msra.mxu0 0
        %436 = vmatprep.subr.bf16.mxu0 0
        %437 = vmatpush1.bf16.msra.mxu0 0
        %438 = vmatprep.subr.bf16.mxu0 0
        %439 = vmatpush1.bf16.msra.mxu0 0
        %440 = vmatprep.subr.bf16.mxu0 0
        %441 = vmatpush1.bf16.msra.mxu0 0
        %442 = vmatprep.subr.bf16.mxu0 0
        %443 = vmatpush1.bf16.msra.mxu0 0
        %444 = vmatprep.subr.bf16.mxu0 0
        %445 = vmatpush1.bf16.msra.mxu0 0
        %446 = vmatprep.subr.bf16.mxu0 0
        %447 = vmatpush1.bf16.msra.mxu0 0
        %448 = vmatprep.subr.bf16.mxu0 0
        %449 = vmatpush1.bf16.msra.mxu0 0
        %450 = vmatprep.subr.bf16.mxu0 0
        %451 = vmatpush1.bf16.msra.mxu0 0
        %452 = vmatprep.subr.bf16.mxu0 0
        %453 = vmatpush1.bf16.msra.mxu0 0
        %454 = vmatprep.subr.bf16.mxu0 0
        %455 = vmatpush1.bf16.msra.mxu0 0
        %456 = vmatprep.mubr.bf16.mxu0 0
        %457 = vmatmul.mubr.bf16.gmra.mrb[0].mxu0 %v415
        %v458 = vpop.f32.mrb[0].mxu0
        %v459 = vadd.f32 0.0, %v458
        %v460 = vpop.f32.mrb[0].mxu0
        %v461 = vadd.f32 0.0, %v460
        %v462 = vpop.f32.mrb[0].mxu0
        %v463 = vadd.f32 0.0, %v462
        %v464 = vpop.f32.mrb[0].mxu0
        %v465 = vadd.f32 0.0, %v464
        %466 = vdwg.mxu0
        %v476 = vunpack.c.l.b16 %v335
        %v477 = vunpack.c.h.b16 %v335
        %v478 = vunpack.c.l.b16 %v336
        %v479 = vunpack.c.h.b16 %v336
        %v480 = vunpack.c.l.b16 %v337
        %v481 = vunpack.c.h.b16 %v337
        %v482 = vunpack.c.l.b16 %v338
        %v483 = vunpack.c.h.b16 %v338
        %v484 = vunpack.c.l.b16 %v339
        %v485 = vunpack.c.h.b16 %v339
        %v486 = vunpack.c.l.b16 %v340
        %v487 = vunpack.c.h.b16 %v340
        %v488 = vunpack.c.l.b16 %v341
        %v489 = vunpack.c.h.b16 %v341
        %v490 = vunpack.c.l.b16 %v342
        %v491 = vunpack.c.h.b16 %v342
        %v492 = vunpack.c.l.b16 %v343
        %v493 = vunpack.c.h.b16 %v343
        %v494 = vpack.c.b16 %v478, %v476
        %v495 = vpack.c.b16 %v479, %v477
        %v496 = vpack.c.b16 %v482, %v480
        %v497 = vpack.c.b16 %v483, %v481
        %v498 = vpack.c.b16 %v486, %v484
        %v499 = vpack.c.b16 %v487, %v485
        %v500 = vpack.c.b16 %v490, %v488
        %v501 = vpack.c.b16 %v491, %v489
        %v502 = vpack.c.b16 %v492, %v492
        %v503 = vpack.c.b16 %v493, %v493
        %v512 = vsel %vm413, %v334, 0
        %v515 = vsel %vm417, %v502, 0
        %v518 = vsel %vm417, %v503, 0
        %520 = vmatprep.subr.bf16.mxu0 %v495
        %521 = vmatpush1.bf16.msra.mxu0 %v494
        %522 = vmatprep.subr.bf16.mxu0 %v497
        %523 = vmatpush1.bf16.msra.mxu0 %v496
        %524 = vmatprep.subr.bf16.mxu0 %v499
        %525 = vmatpush1.bf16.msra.mxu0 %v498
        %526 = vmatprep.subr.bf16.mxu0 %v501
        %527 = vmatpush1.bf16.msra.mxu0 %v500
        %528 = vmatprep.subr.bf16.mxu0 %v518
        %529 = vmatpush1.bf16.msra.mxu0 %v515
        %530 = vmatprep.subr.bf16.mxu0 0
        %531 = vmatpush1.bf16.msra.mxu0 0
        %532 = vmatprep.subr.bf16.mxu0 0
        %533 = vmatpush1.bf16.msra.mxu0 0
        %534 = vmatprep.subr.bf16.mxu0 0
        %535 = vmatpush1.bf16.msra.mxu0 0
        %536 = vmatprep.subr.bf16.mxu0 0
        %537 = vmatpush1.bf16.msra.mxu0 0
        %538 = vmatprep.subr.bf16.mxu0 0
        %539 = vmatpush1.bf16.msra.mxu0 0
        %540 = vmatprep.subr.bf16.mxu0 0
        %541 = vmatpush1.bf16.msra.mxu0 0
        %542 = vmatprep.subr.bf16.mxu0 0
        %543 = vmatpush1.bf16.msra.mxu0 0
        %544 = vmatprep.subr.bf16.mxu0 0
        %545 = vmatpush1.bf16.msra.mxu0 0
        %546 = vmatprep.subr.bf16.mxu0 0
        %547 = vmatpush1.bf16.msra.mxu0 0
        %548 = vmatprep.subr.bf16.mxu0 0
        %549 = vmatpush1.bf16.msra.mxu0 0
        %550 = vmatprep.subr.bf16.mxu0 0
        %551 = vmatpush1.bf16.msra.mxu0 0
        %552 = vmatprep.mubr.bf16.mxu0 0
        %553 = vmatmul.mubr.bf16.gmra.mrb[0].mxu0 %v512
        %v554 = vpop.f32.mrb[0].mxu0
        %v555 = vadd.f32 %v459, %v554
        %v556 = vpop.f32.mrb[0].mxu0
        %v557 = vadd.f32 %v461, %v556
        %v558 = vpop.f32.mrb[0].mxu0
        %v559 = vadd.f32 %v463, %v558
        %v560 = vpop.f32.mrb[0].mxu0
        %v561 = vadd.f32 %v465, %v560
        %562 = vdwg.mxu0
        %s563 = scalar_lea.vmem %s1, 144
        %v564 = vld [vmem:[%s563] sm:$0xff]
        %v565 = vld [vmem:[%s563 + $0x8] sm:$0xff]
        %v566 = vld [vmem:[%s563 + $0x10] sm:$0xff]
        %v567 = vld [vmem:[%s563 + $0x18] sm:$0xff]
        %v568 = vld [vmem:[%s563 + $0x20] sm:$0xff]
        %v569 = vld [vmem:[%s563 + $0x28] sm:$0xff]
        %v570 = vld [vmem:[%s563 + $0x30] sm:$0xff]
        %v571 = vld [vmem:[%s563 + $0x38] sm:$0xff]
        %v572 = vld [vmem:[%s563 + $0x40] sm:$0xff]
        %vm575 = vcmask 1046528
        %v576 = vrot.slane %v334, 1
        %v577 = vrot.slane %v344, 1
        %v578 = vsel %vm575, %v576, %v577
        %v588 = vunpack.c.l.b16 %v564
        %v589 = vunpack.c.h.b16 %v564
        %v590 = vunpack.c.l.b16 %v565
        %v591 = vunpack.c.h.b16 %v565
        %v592 = vunpack.c.l.b16 %v566
        %v593 = vunpack.c.h.b16 %v566
        %v594 = vunpack.c.l.b16 %v567
        %v595 = vunpack.c.h.b16 %v567
        %v596 = vunpack.c.l.b16 %v568
        %v597 = vunpack.c.h.b16 %v568
        %v598 = vunpack.c.l.b16 %v569
        %v599 = vunpack.c.h.b16 %v569
        %v600 = vunpack.c.l.b16 %v570
        %v601 = vunpack.c.h.b16 %v570
        %v602 = vunpack.c.l.b16 %v571
        %v603 = vunpack.c.h.b16 %v571
        %v604 = vunpack.c.l.b16 %v572
        %v605 = vunpack.c.h.b16 %v572
        %v606 = vpack.c.b16 %v590, %v588
        %v607 = vpack.c.b16 %v591, %v589
        %v608 = vpack.c.b16 %v594, %v592
        %v609 = vpack.c.b16 %v595, %v593
        %v610 = vpack.c.b16 %v598, %v596
        %v611 = vpack.c.b16 %v599, %v597
        %v612 = vpack.c.b16 %v602, %v600
        %v613 = vpack.c.b16 %v603, %v601
        %v614 = vpack.c.b16 %v604, %v604
        %v615 = vpack.c.b16 %v605, %v605
        %v625 = vsel %vm413, %v578, 0
        %v628 = vsel %vm417, %v614, 0
        %v631 = vsel %vm417, %v615, 0
        %633 = vmatprep.subr.bf16.mxu0 %v607
        %634 = vmatpush1.bf16.msra.mxu0 %v606
        %635 = vmatprep.subr.bf16.mxu0 %v609
        %636 = vmatpush1.bf16.msra.mxu0 %v608
        %637 = vmatprep.subr.bf16.mxu0 %v611
        %638 = vmatpush1.bf16.msra.mxu0 %v610
        %639 = vmatprep.subr.bf16.mxu0 %v613
        %640 = vmatpush1.bf16.msra.mxu0 %v612
        %641 = vmatprep.subr.bf16.mxu0 %v631
        %642 = vmatpush1.bf16.msra.mxu0 %v628
        %643 = vmatprep.subr.bf16.mxu0 0
        %644 = vmatpush1.bf16.msra.mxu0 0
        %645 = vmatprep.subr.bf16.mxu0 0
        %646 = vmatpush1.bf16.msra.mxu0 0
        %647 = vmatprep.subr.bf16.mxu0 0
        %648 = vmatpush1.bf16.msra.mxu0 0
        %649 = vmatprep.subr.bf16.mxu0 0
        %650 = vmatpush1.bf16.msra.mxu0 0
        %651 = vmatprep.subr.bf16.mxu0 0
        %652 = vmatpush1.bf16.msra.mxu0 0
        %653 = vmatprep.subr.bf16.mxu0 0
        %654 = vmatpush1.bf16.msra.mxu0 0
        %655 = vmatprep.subr.bf16.mxu0 0
        %656 = vmatpush1.bf16.msra.mxu0 0
        %657 = vmatprep.subr.bf16.mxu0 0
        %658 = vmatpush1.bf16.msra.mxu0 0
        %659 = vmatprep.subr.bf16.mxu0 0
        %660 = vmatpush1.bf16.msra.mxu0 0
        %661 = vmatprep.subr.bf16.mxu0 0
        %662 = vmatpush1.bf16.msra.mxu0 0
        %663 = vmatprep.subr.bf16.mxu0 0
        %664 = vmatpush1.bf16.msra.mxu0 0
        %665 = vmatprep.mubr.bf16.mxu0 0
        %666 = vmatmul.mubr.bf16.gmra.mrb[0].mxu0 %v625
        %v667 = vpop.f32.mrb[0].mxu0
        %v668 = vadd.f32 0.0, %v667
        %v669 = vpop.f32.mrb[0].mxu0
        %v670 = vadd.f32 0.0, %v669
        %v671 = vpop.f32.mrb[0].mxu0
        %v672 = vadd.f32 0.0, %v671
        %v673 = vpop.f32.mrb[0].mxu0
        %v674 = vadd.f32 0.0, %v673
        %675 = vdwg.mxu0
        %v676 = vadd.f32 %v555, %v668
        %v677 = vadd.f32 %v557, %v670
        %v678 = vadd.f32 %v559, %v672
        %v679 = vadd.f32 %v561, %v674
        %v680 = vld [vmem:[%s2] sm:$0x3]
        %v682 = vlaneseq
        %v683 = vshrl.u32 %v682, 7
        %v684 = vsub.s32 0, %v683
        %v685 = vrot.slane %v680, %v684
        %v686 = vlaneseq
        %v687 = vshrl.u32 %v686, 7
        %v688 = vsub.s32 1, %v687
        %v689 = vrot.slane %v680, %v688
        %v692 = vadd.f32 %v676, %v685
        %v693 = vadd.f32 %v677, %v689
        %v694 = vadd.f32 %v678, %v685
        %v695 = vadd.f32 %v679, %v689
        %v696 = vmax.f32 %v692, 0.0
        %v697 = vmax.f32 %v693, 0.0
        %v698 = vmax.f32 %v694, 0.0
        %v699 = vmax.f32 %v695, 0.0
        %v700 = vlaneseq
        %vm701 = vcmp.ge.s32.totalorder %v700, 0
        %vm702 = vcmp.lt.s32.totalorder %v700, 144
        %vm703 = vmand %vm701, %vm702
        %704 = vst.msk [vmem:[#allocation2] ss:$8 sm:$0x3] %vm703, 0.0
        %705 = vst.msk [vmem:[#allocation2] ss:$8 sm:$0x0] %vm703, 0.0
        %s706 = scalar_lea.vmem [#allocation2], 33
        %707 = vst.msk [vmem:[%s706] ss:$8 sm:$0x3] %vm703, 0.0
        %708 = vst.msk [vmem:[%s706] ss:$8 sm:$0x0] %vm703, 0.0
        %vm713 = vcmask 1040384
        %v714 = vrot.slane %v696, 7
        %v715 = vrot.slane %v697, 7
        %v716 = vrot.slane %v698, 7
        %v717 = vsel %vm713, %v714, %v716
        %v718 = vrot.slane %v699, 7
        %v719 = vsel %vm713, %v715, %v718
        %726 = vst [vmem:[#allocation2] sm:$0xfe] %v714
        %vm727 = vcmask 130049
        %728 = vst.msk [vmem:[#allocation2 + $0x8] sm:$0xfe] %vm727, %v715
        %729 = vst [vmem:[#allocation2 + $0x10] sm:$0xff] %v717
        %vm730 = vcmask 130048
        %731 = vst.msk [vmem:[#allocation2 + $0x18] sm:$0xff] %vm730, %v719
        %732 = vst [vmem:[#allocation2 + $0x20] sm:$0x1] %v716
        %vm733 = vcmask 122880
        %734 = vst.msk [vmem:[#allocation2 + $0x28] sm:$0x1] %vm733, %v718
        %v735 = vld [vmem:[#allocation2] sm:$0xff]
        %v736 = vld [vmem:[#allocation2 + $0x8] sm:$0xff]
        %v737 = vld [vmem:[#allocation2 + $0x10] sm:$0xff]
        %v738 = vld [vmem:[#allocation2 + $0x18] sm:$0xff]
        %v739 = vpack.c.bf16 %v737, %v735
        %v740 = vpack.c.bf16 %v738, %v736
        %v741 = vld [vmem:[%s3] sm:$0xf]
        %v742 = vld [vmem:[%s3 + $0x4] sm:$0xf]
        %v743 = vld [vmem:[%s3 + $0x8] sm:$0xf]
        %v744 = vld [vmem:[%s3 + $0xc] sm:$0xf]
        %v745 = vld [vmem:[%s3 + $0x10] sm:$0xf]
        %v746 = vld [vmem:[%s3 + $0x14] sm:$0xf]
        %v747 = vld [vmem:[%s3 + $0x18] sm:$0xf]
        %v748 = vld [vmem:[%s3 + $0x1c] sm:$0xf]
        %v749 = vld [vmem:[%s3 + $0x20] sm:$0xf]
        %v750 = vld [vmem:[%s3 + $0x24] sm:$0xf]
        %v751 = vld [vmem:[%s3 + $0x28] sm:$0xf]
        %v752 = vld [vmem:[%s3 + $0x2c] sm:$0xf]
        %v753 = vld [vmem:[%s3 + $0x30] sm:$0xf]
        %v754 = vld [vmem:[%s3 + $0x34] sm:$0xf]
        %v755 = vld [vmem:[%s3 + $0x38] sm:$0xf]
        %v756 = vld [vmem:[%s3 + $0x3c] sm:$0xf]
        %v757 = vld [vmem:[%s3 + $0x40] sm:$0xf]
        %v758 = vld [vmem:[%s3 + $0x44] sm:$0xf]
        %v759 = vld [vmem:[#allocation2] sm:$0xfe]
        %v760 = vld [vmem:[#allocation2 + $0x8] sm:$0xfe]
        %v761 = vld [vmem:[#allocation2 + $0x20] sm:$0x1]
        %v762 = vld [vmem:[#allocation2 + $0x28] sm:$0x1]
        %v763 = vpack.c.bf16 %v737, %v759
        %v764 = vpack.c.bf16 %v738, %v760
        %v765 = vpack.c.bf16 %v761, %v761
        %v766 = vpack.c.bf16 %v762, %v762
        %s767 = scalar_lea.vmem %s3, 72
        %v768 = vld [vmem:[%s767] sm:$0xf]
        %v769 = vld [vmem:[%s767 + $0x4] sm:$0xf]
        %v770 = vld [vmem:[%s767 + $0x8] sm:$0xf]
        %v771 = vld [vmem:[%s767 + $0xc] sm:$0xf]
        %v772 = vld [vmem:[%s767 + $0x10] sm:$0xf]
        %v773 = vld [vmem:[%s767 + $0x14] sm:$0xf]
        %v774 = vld [vmem:[%s767 + $0x18] sm:$0xf]
        %v775 = vld [vmem:[%s767 + $0x1c] sm:$0xf]
        %v776 = vld [vmem:[%s767 + $0x20] sm:$0xf]
        %v777 = vld [vmem:[%s767 + $0x24] sm:$0xf]
        %v778 = vld [vmem:[%s767 + $0x28] sm:$0xf]
        %v779 = vld [vmem:[%s767 + $0x2c] sm:$0xf]
        %v780 = vld [vmem:[%s767 + $0x30] sm:$0xf]
        %v781 = vld [vmem:[%s767 + $0x34] sm:$0xf]
        %v782 = vld [vmem:[%s767 + $0x38] sm:$0xf]
        %v783 = vld [vmem:[%s767 + $0x3c] sm:$0xf]
        %v784 = vld [vmem:[%s767 + $0x40] sm:$0xf]
        %v785 = vld [vmem:[%s767 + $0x44] sm:$0xf]
        %v787 = vshrl.u32 %v763, 16
        %v789 = vshll.u32 %v763, 16
        %v791 = vrot.slane %v789, 1
        %v792 = vor.u32 %v787, %v791
        %v794 = vshll.u32 %v765, 16
        %v796 = vrot.slane %v794, 1
        %v797 = vsel %vm355, %v792, %v796
        %v799 = vshrl.u32 %v764, 16
        %v801 = vshll.u32 %v764, 16
        %v803 = vrot.slane %v801, 1
        %v804 = vor.u32 %v799, %v803
        %v806 = vshll.u32 %v766, 16
        %v808 = vrot.slane %v806, 1
        %v809 = vsel %vm355, %v804, %v808
        %v829 = vunpack.c.l.b16 %v768
        %v830 = vunpack.c.l.b16 %v769
        %v831 = vunpack.c.l.b16 %v770
        %v832 = vunpack.c.l.b16 %v771
        %v833 = vunpack.c.l.b16 %v772
        %v834 = vunpack.c.l.b16 %v773
        %v835 = vunpack.c.l.b16 %v774
        %v836 = vunpack.c.l.b16 %v775
        %v837 = vunpack.c.l.b16 %v776
        %v838 = vunpack.c.l.b16 %v777
        %v839 = vunpack.c.l.b16 %v778
        %v840 = vunpack.c.l.b16 %v779
        %v841 = vunpack.c.l.b16 %v780
        %v842 = vunpack.c.l.b16 %v781
        %v843 = vunpack.c.l.b16 %v782
        %v844 = vunpack.c.l.b16 %v783
        %v845 = vunpack.c.l.b16 %v784
        %v846 = vunpack.c.l.b16 %v785
        %v847 = vpack.c.b16 %v830, %v829
        %v848 = vpack.c.b16 %v832, %v831
        %v849 = vpack.c.b16 %v834, %v833
        %v850 = vpack.c.b16 %v836, %v835
        %v851 = vpack.c.b16 %v838, %v837
        %v852 = vpack.c.b16 %v840, %v839
        %v853 = vpack.c.b16 %v842, %v841
        %v854 = vpack.c.b16 %v844, %v843
        %v855 = vpack.c.b16 %v846, %v845
        %v866 = vsel %vm730, %v809, 0
        %868 = vmatprep.subr.bf16.mxu0 0
        %869 = vmatpush1.bf16.msra.mxu0 %v847
        %870 = vmatprep.subr.bf16.mxu0 0
        %871 = vmatpush1.bf16.msra.mxu0 %v848
        %872 = vmatprep.subr.bf16.mxu0 0
        %873 = vmatpush1.bf16.msra.mxu0 %v849
        %874 = vmatprep.subr.bf16.mxu0 0
        %875 = vmatpush1.bf16.msra.mxu0 %v850
        %876 = vmatprep.subr.bf16.mxu0 0
        %877 = vmatpush1.bf16.msra.mxu0 %v851
        %878 = vmatprep.subr.bf16.mxu0 0
        %879 = vmatpush1.bf16.msra.mxu0 %v852
        %880 = vmatprep.subr.bf16.mxu0 0
        %881 = vmatpush1.bf16.msra.mxu0 %v853
        %882 = vmatprep.subr.bf16.mxu0 0
        %883 = vmatpush1.bf16.msra.mxu0 %v854
        %884 = vmatprep.subr.bf16.mxu0 0
        %885 = vmatpush1.bf16.msra.mxu0 %v855
        %886 = vmatprep.subr.bf16.mxu0 0
        %887 = vmatpush1.bf16.msra.mxu0 0
        %888 = vmatprep.subr.bf16.mxu0 0
        %889 = vmatpush1.bf16.msra.mxu0 0
        %890 = vmatprep.subr.bf16.mxu0 0
        %891 = vmatpush1.bf16.msra.mxu0 0
        %892 = vmatprep.subr.bf16.mxu0 0
        %893 = vmatpush1.bf16.msra.mxu0 0
        %894 = vmatprep.subr.bf16.mxu0 0
        %895 = vmatpush1.bf16.msra.mxu0 0
        %896 = vmatprep.subr.bf16.mxu0 0
        %897 = vmatpush1.bf16.msra.mxu0 0
        %898 = vmatprep.subr.bf16.mxu0 0
        %899 = vmatpush1.bf16.msra.mxu0 0
        %900 = vmatprep.mubr.bf16.mxu0 %v866
        %901 = vmatmul.mubr.bf16.gmra.mrb[0].mxu0 %v797
        %v902 = vpop.f32.mrb[0].mxu0
        %v903 = vadd.f32 0.0, %v902
        %v904 = vpop.f32.mrb[0].mxu0
        %v905 = vpop.f32.mrb[0].mxu0
        %v906 = vadd.f32 0.0, %v905
        %v907 = vpop.f32.mrb[0].mxu0
        %908 = vdwg.mxu0
        %v927 = vunpack.c.l.b16 %v741
        %v928 = vunpack.c.l.b16 %v742
        %v929 = vunpack.c.l.b16 %v743
        %v930 = vunpack.c.l.b16 %v744
        %v931 = vunpack.c.l.b16 %v745
        %v932 = vunpack.c.l.b16 %v746
        %v933 = vunpack.c.l.b16 %v747
        %v934 = vunpack.c.l.b16 %v748
        %v935 = vunpack.c.l.b16 %v749
        %v936 = vunpack.c.l.b16 %v750
        %v937 = vunpack.c.l.b16 %v751
        %v938 = vunpack.c.l.b16 %v752
        %v939 = vunpack.c.l.b16 %v753
        %v940 = vunpack.c.l.b16 %v754
        %v941 = vunpack.c.l.b16 %v755
        %v942 = vunpack.c.l.b16 %v756
        %v943 = vunpack.c.l.b16 %v757
        %v944 = vunpack.c.l.b16 %v758
        %v945 = vpack.c.b16 %v928, %v927
        %v946 = vpack.c.b16 %v930, %v929
        %v947 = vpack.c.b16 %v932, %v931
        %v948 = vpack.c.b16 %v934, %v933
        %v949 = vpack.c.b16 %v936, %v935
        %v950 = vpack.c.b16 %v938, %v937
        %v951 = vpack.c.b16 %v940, %v939
        %v952 = vpack.c.b16 %v942, %v941
        %v953 = vpack.c.b16 %v944, %v943
        %v964 = vsel %vm730, %v740, 0
        %966 = vmatprep.subr.bf16.mxu0 0
        %967 = vmatpush1.bf16.msra.mxu0 %v945
        %968 = vmatprep.subr.bf16.mxu0 0
        %969 = vmatpush1.bf16.msra.mxu0 %v946
        %970 = vmatprep.subr.bf16.mxu0 0
        %971 = vmatpush1.bf16.msra.mxu0 %v947
        %972 = vmatprep.subr.bf16.mxu0 0
        %973 = vmatpush1.bf16.msra.mxu0 %v948
        %974 = vmatprep.subr.bf16.mxu0 0
        %975 = vmatpush1.bf16.msra.mxu0 %v949
        %976 = vmatprep.subr.bf16.mxu0 0
        %977 = vmatpush1.bf16.msra.mxu0 %v950
        %978 = vmatprep.subr.bf16.mxu0 0
        %979 = vmatpush1.bf16.msra.mxu0 %v951
        %980 = vmatprep.subr.bf16.mxu0 0
        %981 = vmatpush1.bf16.msra.mxu0 %v952
        %982 = vmatprep.subr.bf16.mxu0 0
        %983 = vmatpush1.bf16.msra.mxu0 %v953
        %984 = vmatprep.subr.bf16.mxu0 0
        %985 = vmatpush1.bf16.msra.mxu0 0
        %986 = vmatprep.subr.bf16.mxu0 0
        %987 = vmatpush1.bf16.msra.mxu0 0
        %988 = vmatprep.subr.bf16.mxu0 0
        %989 = vmatpush1.bf16.msra.mxu0 0
        %990 = vmatprep.subr.bf16.mxu0 0
        %991 = vmatpush1.bf16.msra.mxu0 0
        %992 = vmatprep.subr.bf16.mxu0 0
        %993 = vmatpush1.bf16.msra.mxu0 0
        %994 = vmatprep.subr.bf16.mxu0 0
        %995 = vmatpush1.bf16.msra.mxu0 0
        %996 = vmatprep.subr.bf16.mxu0 0
        %997 = vmatpush1.bf16.msra.mxu0 0
        %998 = vmatprep.mubr.bf16.mxu0 %v964
        %999 = vmatmul.mubr.bf16.gmra.mrb[0].mxu0 %v739
        %v1000 = vpop.f32.mrb[0].mxu0
        %v1001 = vadd.f32 %v903, %v1000
        %v1002 = vpop.f32.mrb[0].mxu0
        %v1003 = vpop.f32.mrb[0].mxu0
        %v1004 = vadd.f32 %v906, %v1003
        %v1005 = vpop.f32.mrb[0].mxu0
        %1006 = vdwg.mxu0
        %v1007 = vld [vmem:[#allocation2] sm:$0xfc]
        %v1008 = vld [vmem:[#allocation2 + $0x8] sm:$0xfc]
        %v1009 = vld [vmem:[#allocation2 + $0x20] sm:$0x3]
        %v1010 = vld [vmem:[#allocation2 + $0x28] sm:$0x3]
        %v1011 = vpack.c.bf16 %v737, %v1007
        %v1012 = vpack.c.bf16 %v738, %v1008
        %v1013 = vpack.c.bf16 %v1009, %v1009
        %v1014 = vpack.c.bf16 %v1010, %v1010
        %s1015 = scalar_lea.vmem %s3, 144
        %v1016 = vld [vmem:[%s1015] sm:$0xf]
        %v1017 = vld [vmem:[%s1015 + $0x4] sm:$0xf]
        %v1018 = vld [vmem:[%s1015 + $0x8] sm:$0xf]
        %v1019 = vld [vmem:[%s1015 + $0xc] sm:$0xf]
        %v1020 = vld [vmem:[%s1015 + $0x10] sm:$0xf]
        %v1021 = vld [vmem:[%s1015 + $0x14] sm:$0xf]
        %v1022 = vld [vmem:[%s1015 + $0x18] sm:$0xf]
        %v1023 = vld [vmem:[%s1015 + $0x1c] sm:$0xf]
        %v1024 = vld [vmem:[%s1015 + $0x20] sm:$0xf]
        %v1025 = vld [vmem:[%s1015 + $0x24] sm:$0xf]
        %v1026 = vld [vmem:[%s1015 + $0x28] sm:$0xf]
        %v1027 = vld [vmem:[%s1015 + $0x2c] sm:$0xf]
        %v1028 = vld [vmem:[%s1015 + $0x30] sm:$0xf]
        %v1029 = vld [vmem:[%s1015 + $0x34] sm:$0xf]
        %v1030 = vld [vmem:[%s1015 + $0x38] sm:$0xf]
        %v1031 = vld [vmem:[%s1015 + $0x3c] sm:$0xf]
        %v1032 = vld [vmem:[%s1015 + $0x40] sm:$0xf]
        %v1033 = vld [vmem:[%s1015 + $0x44] sm:$0xf]
        %v1038 = vrot.slane %v1011, 1
        %v1039 = vrot.slane %v1013, 1
        %v1040 = vsel %vm575, %v1038, %v1039
        %v1041 = vrot.slane %v1012, 1
        %v1042 = vrot.slane %v1014, 1
        %v1043 = vsel %vm575, %v1041, %v1042
        %v1063 = vunpack.c.l.b16 %v1016
        %v1064 = vunpack.c.l.b16 %v1017
        %v1065 = vunpack.c.l.b16 %v1018
        %v1066 = vunpack.c.l.b16 %v1019
        %v1067 = vunpack.c.l.b16 %v1020
        %v1068 = vunpack.c.l.b16 %v1021
        %v1069 = vunpack.c.l.b16 %v1022
        %v1070 = vunpack.c.l.b16 %v1023
        %v1071 = vunpack.c.l.b16 %v1024
        %v1072 = vunpack.c.l.b16 %v1025
        %v1073 = vunpack.c.l.b16 %v1026
        %v1074 = vunpack.c.l.b16 %v1027
        %v1075 = vunpack.c.l.b16 %v1028
        %v1076 = vunpack.c.l.b16 %v1029
        %v1077 = vunpack.c.l.b16 %v1030
        %v1078 = vunpack.c.l.b16 %v1031
        %v1079 = vunpack.c.l.b16 %v1032
        %v1080 = vunpack.c.l.b16 %v1033
        %v1081 = vpack.c.b16 %v1064, %v1063
        %v1082 = vpack.c.b16 %v1066, %v1065
        %v1083 = vpack.c.b16 %v1068, %v1067
        %v1084 = vpack.c.b16 %v1070, %v1069
        %v1085 = vpack.c.b16 %v1072, %v1071
        %v1086 = vpack.c.b16 %v1074, %v1073
        %v1087 = vpack.c.b16 %v1076, %v1075
        %v1088 = vpack.c.b16 %v1078, %v1077
        %v1089 = vpack.c.b16 %v1080, %v1079
        %v1100 = vsel %vm730, %v1043, 0
        %1102 = vmatprep.subr.bf16.mxu0 0
        %1103 = vmatpush1.bf16.msra.mxu0 %v1081
        %1104 = vmatprep.subr.bf16.mxu0 0
        %1105 = vmatpush1.bf16.msra.mxu0 %v1082
        %1106 = vmatprep.subr.bf16.mxu0 0
        %1107 = vmatpush1.bf16.msra.mxu0 %v1083
        %1108 = vmatprep.subr.bf16.mxu0 0
        %1109 = vmatpush1.bf16.msra.mxu0 %v1084
        %1110 = vmatprep.subr.bf16.mxu0 0
        %1111 = vmatpush1.bf16.msra.mxu0 %v1085
        %1112 = vmatprep.subr.bf16.mxu0 0
        %1113 = vmatpush1.bf16.msra.mxu0 %v1086
        %1114 = vmatprep.subr.bf16.mxu0 0
        %1115 = vmatpush1.bf16.msra.mxu0 %v1087
        %1116 = vmatprep.subr.bf16.mxu0 0
        %1117 = vmatpush1.bf16.msra.mxu0 %v1088
        %1118 = vmatprep.subr.bf16.mxu0 0
        %1119 = vmatpush1.bf16.msra.mxu0 %v1089
        %1120 = vmatprep.subr.bf16.mxu0 0
        %1121 = vmatpush1.bf16.msra.mxu0 0
        %1122 = vmatprep.subr.bf16.mxu0 0
        %1123 = vmatpush1.bf16.msra.mxu0 0
        %1124 = vmatprep.subr.bf16.mxu0 0
        %1125 = vmatpush1.bf16.msra.mxu0 0
        %1126 = vmatprep.subr.bf16.mxu0 0
        %1127 = vmatpush1.bf16.msra.mxu0 0
        %1128 = vmatprep.subr.bf16.mxu0 0
        %1129 = vmatpush1.bf16.msra.mxu0 0
        %1130 = vmatprep.subr.bf16.mxu0 0
        %1131 = vmatpush1.bf16.msra.mxu0 0
        %1132 = vmatprep.subr.bf16.mxu0 0
        %1133 = vmatpush1.bf16.msra.mxu0 0
        %1134 = vmatprep.mubr.bf16.mxu0 %v1100
        %1135 = vmatmul.mubr.bf16.gmra.mrb[0].mxu0 %v1040
        %v1136 = vpop.f32.mrb[0].mxu0
        %v1137 = vadd.f32 0.0, %v1136
        %v1138 = vpop.f32.mrb[0].mxu0
        %v1139 = vpop.f32.mrb[0].mxu0
        %v1140 = vadd.f32 0.0, %v1139
        %v1141 = vpop.f32.mrb[0].mxu0
        %1142 = vdwg.mxu0
        %v1143 = vadd.f32 %v1001, %v1137
        %v1144 = vadd.f32 %v1004, %v1140
        %v1145 = vld [vmem:[%s4] sm:$0x1]
        %v1147 = vlaneseq
        %v1148 = vshrl.u32 %v1147, 7
        %v1149 = vsub.s32 0, %v1148
        %v1150 = vrot.slane %v1145, %v1149
        %v1152 = vadd.f32 %v1143, %v1150
        %v1153 = vadd.f32 %v1144, %v1150
        %v1154 = vmax.f32 %v1152, 0.0
        %v1155 = vmax.f32 %v1153, 0.0
        %v1156 = vpack.c.bf16 %v1155, %v1154
        %v1157 = vld [vmem:[%s5] sm:$0xff]
        %v1158 = vld [vmem:[%s5 + $0x8] sm:$0xff]
        %v1159 = vld [vmem:[%s5 + $0x10] sm:$0xff]
        %v1160 = vld [vmem:[%s5 + $0x18] sm:$0xff]
        %v1161 = vld [vmem:[%s5 + $0x20] sm:$0xff]
        %v1162 = vld [vmem:[%s5 + $0x28] sm:$0xff]
        %v1163 = vld [vmem:[%s5 + $0x30] sm:$0xff]
        %v1164 = vld [vmem:[%s5 + $0x38] sm:$0xff]
        %v1165 = vld [vmem:[%s5 + $0x40] sm:$0xff]
        %v1166 = vld [vmem:[%s5 + $0x48] sm:$0xff]
        %v1167 = vld [vmem:[%s5 + $0x50] sm:$0xff]
        %v1168 = vld [vmem:[%s5 + $0x58] sm:$0xff]
        %v1169 = vld [vmem:[%s5 + $0x60] sm:$0xff]
        %v1170 = vld [vmem:[%s5 + $0x68] sm:$0xff]
        %v1171 = vld [vmem:[%s5 + $0x70] sm:$0xff]
        %v1172 = vld [vmem:[%s5 + $0x78] sm:$0xff]
        %v1173 = vld [vmem:[%s6] sm:$0x3]
        %v1175 = vlaneseq
        %v1176 = vshrl.u32 %v1175, 7
        %v1177 = vsub.s32 0, %v1176
        %v1178 = vrot.slane %v1173, %v1177
        %v1179 = vlaneseq
        %v1180 = vshrl.u32 %v1179, 7
        %v1181 = vsub.s32 1, %v1180
        %v1182 = vrot.slane %v1173, %v1181
        %v1201 = vunpack.c.l.b16 %v1157
        %v1202 = vunpack.c.h.b16 %v1157
        %v1203 = vunpack.c.l.b16 %v1158
        %v1204 = vunpack.c.h.b16 %v1158
        %v1205 = vunpack.c.l.b16 %v1159
        %v1206 = vunpack.c.h.b16 %v1159
        %v1207 = vunpack.c.l.b16 %v1160
        %v1208 = vunpack.c.h.b16 %v1160
        %v1209 = vunpack.c.l.b16 %v1161
        %v1210 = vunpack.c.h.b16 %v1161
        %v1211 = vunpack.c.l.b16 %v1162
        %v1212 = vunpack.c.h.b16 %v1162
        %v1213 = vunpack.c.l.b16 %v1163
        %v1214 = vunpack.c.h.b16 %v1163
        %v1215 = vunpack.c.l.b16 %v1164
        %v1216 = vunpack.c.h.b16 %v1164
        %v1217 = vunpack.c.l.b16 %v1165
        %v1218 = vunpack.c.h.b16 %v1165
        %v1219 = vunpack.c.l.b16 %v1166
        %v1220 = vunpack.c.h.b16 %v1166
        %v1221 = vunpack.c.l.b16 %v1167
        %v1222 = vunpack.c.h.b16 %v1167
        %v1223 = vunpack.c.l.b16 %v1168
        %v1224 = vunpack.c.h.b16 %v1168
        %v1225 = vunpack.c.l.b16 %v1169
        %v1226 = vunpack.c.h.b16 %v1169
        %v1227 = vunpack.c.l.b16 %v1170
        %v1228 = vunpack.c.h.b16 %v1170
        %v1229 = vunpack.c.l.b16 %v1171
        %v1230 = vunpack.c.h.b16 %v1171
        %v1231 = vunpack.c.l.b16 %v1172
        %v1232 = vunpack.c.h.b16 %v1172
        %v1233 = vpack.c.b16 %v1203, %v1201
        %v1234 = vpack.c.b16 %v1204, %v1202
        %v1235 = vpack.c.b16 %v1207, %v1205
        %v1236 = vpack.c.b16 %v1208, %v1206
        %v1237 = vpack.c.b16 %v1211, %v1209
        %v1238 = vpack.c.b16 %v1212, %v1210
        %v1239 = vpack.c.b16 %v1215, %v1213
        %v1240 = vpack.c.b16 %v1216, %v1214
        %v1241 = vpack.c.b16 %v1219, %v1217
        %v1242 = vpack.c.b16 %v1220, %v1218
        %v1243 = vpack.c.b16 %v1223, %v1221
        %v1244 = vpack.c.b16 %v1224, %v1222
        %v1245 = vpack.c.b16 %v1227, %v1225
        %v1246 = vpack.c.b16 %v1228, %v1226
        %v1247 = vpack.c.b16 %v1231, %v1229
        %v1248 = vpack.c.b16 %v1232, %v1230
        %1265 = vmatprep.subr.bf16.mxu0 %v1234
        %1266 = vmatpush1.bf16.msra.mxu0 %v1233
        %1267 = vmatprep.subr.bf16.mxu0 %v1236
        %1268 = vmatpush1.bf16.msra.mxu0 %v1235
        %1269 = vmatprep.subr.bf16.mxu0 %v1238
        %1270 = vmatpush1.bf16.msra.mxu0 %v1237
        %1271 = vmatprep.subr.bf16.mxu0 %v1240
        %1272 = vmatpush1.bf16.msra.mxu0 %v1239
        %1273 = vmatprep.subr.bf16.mxu0 %v1242
        %1274 = vmatpush1.bf16.msra.mxu0 %v1241
        %1275 = vmatprep.subr.bf16.mxu0 %v1244
        %1276 = vmatpush1.bf16.msra.mxu0 %v1243
        %1277 = vmatprep.subr.bf16.mxu0 %v1246
        %1278 = vmatpush1.bf16.msra.mxu0 %v1245
        %1279 = vmatprep.subr.bf16.mxu0 %v1248
        %1280 = vmatpush1.bf16.msra.mxu0 %v1247
        %1281 = vmatprep.subr.bf16.mxu0 0
        %1282 = vmatpush1.bf16.msra.mxu0 0
        %1283 = vmatprep.subr.bf16.mxu0 0
        %1284 = vmatpush1.bf16.msra.mxu0 0
        %1285 = vmatprep.subr.bf16.mxu0 0
        %1286 = vmatpush1.bf16.msra.mxu0 0
        %1287 = vmatprep.subr.bf16.mxu0 0
        %1288 = vmatpush1.bf16.msra.mxu0 0
        %1289 = vmatprep.subr.bf16.mxu0 0
        %1290 = vmatpush1.bf16.msra.mxu0 0
        %1291 = vmatprep.subr.bf16.mxu0 0
        %1292 = vmatpush1.bf16.msra.mxu0 0
        %1293 = vmatprep.subr.bf16.mxu0 0
        %1294 = vmatpush1.bf16.msra.mxu0 0
        %1295 = vmatprep.subr.bf16.mxu0 0
        %1296 = vmatpush1.bf16.msra.mxu0 0
        %1297 = vmatprep.mubr.bf16.mxu0 0
        %1298 = vmatmul.mubr.bf16.gmra.mrb[0].mxu0 %v1156
        %v1299 = vpop.f32.mrb[0].mxu0
        %v1300 = vadd.f32 %v1178, %v1299
        %v1301 = vpop.f32.mrb[0].mxu0
        %v1302 = vadd.f32 %v1182, %v1301
        %v1303 = vpop.f32.mrb[0].mxu0
        %v1304 = vadd.f32 %v1178, %v1303
        %v1305 = vpop.f32.mrb[0].mxu0
        %v1306 = vadd.f32 %v1182, %v1305
        %1307 = vdwg.mxu0
        %v1308 = vmax.f32 %v1300, 0.0
        %v1309 = vmax.f32 %v1302, 0.0
        %v1310 = vmax.f32 %v1304, 0.0
        %v1311 = vmax.f32 %v1306, 0.0
        %v1312 = vpack.c.bf16 %v1310, %v1308
        %v1313 = vpack.c.bf16 %v1311, %v1309
        %v1314 = vld [vmem:[%s7] sm:$0xf]
        %v1315 = vld [vmem:[%s7 + $0x4] sm:$0xf]
        %v1316 = vld [vmem:[%s7 + $0x8] sm:$0xf]
        %v1317 = vld [vmem:[%s7 + $0xc] sm:$0xf]
        %v1318 = vld [vmem:[%s7 + $0x10] sm:$0xf]
        %v1319 = vld [vmem:[%s7 + $0x14] sm:$0xf]
        %v1320 = vld [vmem:[%s7 + $0x18] sm:$0xf]
        %v1321 = vld [vmem:[%s7 + $0x1c] sm:$0xf]
        %v1322 = vld [vmem:[%s7 + $0x20] sm:$0xf]
        %v1323 = vld [vmem:[%s7 + $0x24] sm:$0xf]
        %v1324 = vld [vmem:[%s7 + $0x28] sm:$0xf]
        %v1325 = vld [vmem:[%s7 + $0x2c] sm:$0xf]
        %v1326 = vld [vmem:[%s7 + $0x30] sm:$0xf]
        %v1327 = vld [vmem:[%s7 + $0x34] sm:$0xf]
        %v1328 = vld [vmem:[%s7 + $0x38] sm:$0xf]
        %v1329 = vld [vmem:[%s7 + $0x3c] sm:$0xf]
        %v1330 = vld [vmem:[%s7 + $0x40] sm:$0xf]
        %v1331 = vld [vmem:[%s7 + $0x44] sm:$0xf]
        %v1332 = vld [vmem:[%s7 + $0x48] sm:$0xf]
        %v1333 = vld [vmem:[%s7 + $0x4c] sm:$0xf]
        %v1334 = vld [vmem:[%s7 + $0x50] sm:$0xf]
        %v1335 = vld [vmem:[%s7 + $0x54] sm:$0xf]
        %v1336 = vld [vmem:[%s7 + $0x58] sm:$0xf]
        %v1337 = vld [vmem:[%s7 + $0x5c] sm:$0xf]
        %v1338 = vld [vmem:[%s7 + $0x60] sm:$0xf]
        %v1339 = vld [vmem:[%s7 + $0x64] sm:$0xf]
        %v1340 = vld [vmem:[%s7 + $0x68] sm:$0xf]
        %v1341 = vld [vmem:[%s7 + $0x6c] sm:$0xf]
        %v1342 = vld [vmem:[%s7 + $0x70] sm:$0xf]
        %v1343 = vld [vmem:[%s7 + $0x74] sm:$0xf]
        %v1344 = vld [vmem:[%s7 + $0x78] sm:$0xf]
        %v1345 = vld [vmem:[%s7 + $0x7c] sm:$0xf]
        %v1378 = vunpack.c.l.b16 %v1314
        %v1379 = vunpack.c.l.b16 %v1315
        %v1380 = vunpack.c.l.b16 %v1316
        %v1381 = vunpack.c.l.b16 %v1317
        %v1382 = vunpack.c.l.b16 %v1318
        %v1383 = vunpack.c.l.b16 %v1319
        %v1384 = vunpack.c.l.b16 %v1320
        %v1385 = vunpack.c.l.b16 %v1321
        %v1386 = vunpack.c.l.b16 %v1322
        %v1387 = vunpack.c.l.b16 %v1323
        %v1388 = vunpack.c.l.b16 %v1324
        %v1389 = vunpack.c.l.b16 %v1325
        %v1390 = vunpack.c.l.b16 %v1326
        %v1391 = vunpack.c.l.b16 %v1327
        %v1392 = vunpack.c.l.b16 %v1328
        %v1393 = vunpack.c.l.b16 %v1329
        %v1394 = vunpack.c.l.b16 %v1330
        %v1395 = vunpack.c.l.b16 %v1331
        %v1396 = vunpack.c.l.b16 %v1332
        %v1397 = vunpack.c.l.b16 %v1333
        %v1398 = vunpack.c.l.b16 %v1334
        %v1399 = vunpack.c.l.b16 %v1335
        %v1400 = vunpack.c.l.b16 %v1336
        %v1401 = vunpack.c.l.b16 %v1337
        %v1402 = vunpack.c.l.b16 %v1338
        %v1403 = vunpack.c.l.b16 %v1339
        %v1404 = vunpack.c.l.b16 %v1340
        %v1405 = vunpack.c.l.b16 %v1341
        %v1406 = vunpack.c.l.b16 %v1342
        %v1407 = vunpack.c.l.b16 %v1343
        %v1408 = vunpack.c.l.b16 %v1344
        %v1409 = vunpack.c.l.b16 %v1345
        %v1410 = vpack.c.b16 %v1379, %v1378
        %v1411 = vpack.c.b16 %v1381, %v1380
        %v1412 = vpack.c.b16 %v1383, %v1382
        %v1413 = vpack.c.b16 %v1385, %v1384
        %v1414 = vpack.c.b16 %v1387, %v1386
        %v1415 = vpack.c.b16 %v1389, %v1388
        %v1416 = vpack.c.b16 %v1391, %v1390
        %v1417 = vpack.c.b16 %v1393, %v1392
        %v1418 = vpack.c.b16 %v1395, %v1394
        %v1419 = vpack.c.b16 %v1397, %v1396
        %v1420 = vpack.c.b16 %v1399, %v1398
        %v1421 = vpack.c.b16 %v1401, %v1400
        %v1422 = vpack.c.b16 %v1403, %v1402
        %v1423 = vpack.c.b16 %v1405, %v1404
        %v1424 = vpack.c.b16 %v1407, %v1406
        %v1425 = vpack.c.b16 %v1409, %v1408
        %1442 = vmatprep.subr.bf16.mxu0 0
        %1443 = vmatpush1.bf16.msra.mxu0 %v1410
        %1444 = vmatprep.subr.bf16.mxu0 0
        %1445 = vmatpush1.bf16.msra.mxu0 %v1411
        %1446 = vmatprep.subr.bf16.mxu0 0
        %1447 = vmatpush1.bf16.msra.mxu0 %v1412
        %1448 = vmatprep.subr.bf16.mxu0 0
        %1449 = vmatpush1.bf16.msra.mxu0 %v1413
        %1450 = vmatprep.subr.bf16.mxu0 0
        %1451 = vmatpush1.bf16.msra.mxu0 %v1414
        %1452 = vmatprep.subr.bf16.mxu0 0
        %1453 = vmatpush1.bf16.msra.mxu0 %v1415
        %1454 = vmatprep.subr.bf16.mxu0 0
        %1455 = vmatpush1.bf16.msra.mxu0 %v1416
        %1456 = vmatprep.subr.bf16.mxu0 0
        %1457 = vmatpush1.bf16.msra.mxu0 %v1417
        %1458 = vmatprep.subr.bf16.mxu0 0
        %1459 = vmatpush1.bf16.msra.mxu0 %v1418
        %1460 = vmatprep.subr.bf16.mxu0 0
        %1461 = vmatpush1.bf16.msra.mxu0 %v1419
        %1462 = vmatprep.subr.bf16.mxu0 0
        %1463 = vmatpush1.bf16.msra.mxu0 %v1420
        %1464 = vmatprep.subr.bf16.mxu0 0
        %1465 = vmatpush1.bf16.msra.mxu0 %v1421
        %1466 = vmatprep.subr.bf16.mxu0 0
        %1467 = vmatpush1.bf16.msra.mxu0 %v1422
        %1468 = vmatprep.subr.bf16.mxu0 0
        %1469 = vmatpush1.bf16.msra.mxu0 %v1423
        %1470 = vmatprep.subr.bf16.mxu0 0
        %1471 = vmatpush1.bf16.msra.mxu0 %v1424
        %1472 = vmatprep.subr.bf16.mxu0 0
        %1473 = vmatpush1.bf16.msra.mxu0 %v1425
        %1474 = vmatprep.mubr.bf16.mxu0 %v1313
        %1475 = vmatmul.mubr.bf16.gmra.mrb[0].mxu0 %v1312
        %v1476 = vpop.f32.mrb[0].mxu0
        %v1477 = vadd.f32 0.0, %v1476
        %v1478 = vpop.f32.mrb[0].mxu0
        %v1479 = vpop.f32.mrb[0].mxu0
        %v1480 = vadd.f32 0.0, %v1479
        %v1481 = vpop.f32.mrb[0].mxu0
        %1482 = vdwg.mxu0
        %vm1483 = vcmask 80896
        %v1484 = vsel %vm1483, %v1477, 0.0
        %v1485 = vsel %vm1483, %v1480, 0.0
        %v1486 = vadd.f32 %v1484, %v1485
        %v1487 = vrot.slane %v1486, 4
        %v1488 = vadd.f32 %v1486, %v1487
        %v1489 = vrot.slane %v1488, 2
        %v1490 = vadd.f32 %v1488, %v1489
        %v1491 = vrot.slane %v1490, 1
        %v1492 = vadd.f32 %v1490, %v1491
        %v1493 = vmul.f32 %v1492, 0.00390625
        %v1494 = vld [vmem:[%s8] sm:$0x1]
        %v1495 = vadd.f32 %v1493, %v1494
        %vm1496 = vcmask 73728
        %1497 = vst.msk [vmem:[%s324] sm:$0x1] %vm1496, %v1495
        %s1498 = sand.u32 %s225, 1
        %s1499 = scalar_lea.sflag [#allocation4], %s1498
        %s1500 = sand.u32 %s225, 1
        %s1501 = scalar_lea.vmem [#allocation3], %s1500
        // Predicated region
        $region57: #{fused_forward.1} parent=55 // pred_check
          %p1502 = pneg %p235
        $region58: #{fused_forward.1} parent=55 // pred_check_branch
          %1504 = sbr.rel (%p1502) target = $region60
        $region59: #{fused_forward.1} parent=55 // pred_region
          %s1506 = ssub.s32 16, 16
          %1507 = vsyncadd %s1499, %s1506
          %s1508 = smul.addr %s23, 16
          %s1509 = scalar_lea.hbm %s9, %s1508
          %s1511 = sshll.u32 %s1501, 4
          %s1512 = int_to_ptr.vmem [resolvable:$true] %s1511
          %1514 = dma.vmem_to_hbm [thread:$0]  %s1512, 16, %s1509, %s1499
        $region60: #{fused_forward.1} parent=55 // pred_fallthru
          _
      $region56: #{fused_forward.1} parent=5 // pred_fallthru
        _
      %p1515 = scmp.le.s32.totalorder 2, %s18
      // Predicated region
      $region61: #{fused_forward.1} parent=5 // pred_check
        %p1516 = pneg %p1515
      $region62: #{fused_forward.1} parent=5 // pred_check_branch
        %1518 = sbr.rel (%p1516) target = $region64
      $region63: #{fused_forward.1} parent=5 // pred_region
        %s1519 = ssub.s32 %s18, 2
        // Predicated region
        $region65: #{fused_forward.1} parent=63 // pred_check
          %p1520 = pneg %p241
        $region66: #{fused_forward.1} parent=63 // pred_check_branch
          %1522 = sbr.rel (%p1520) target = $region68
        $region67: #{fused_forward.1} parent=63 // pred_region
          %s1523 = sand.u32 %s226, 1
          %s1524 = scalar_lea.sflag [#allocation4], %s1523
          %s1525 = sand.u32 %s226, 1
          %s1526 = scalar_lea.vmem [#allocation3], %s1525
          %1527 = dma.done %s1524, 16
        $region68: #{fused_forward.1} parent=63 // pred_fallthru
          _
      $region64: #{fused_forward.1} parent=5 // pred_fallthru
        _
    $region6: #{fused_forward.1} parent=1 // loop_footer
      %s22 = sadd.s32 1, %s18
    $region7: #{fused_forward.1} parent=1 // loop_footer_branch
      %17 = sbr.rel target = $region3
    $region8: #{fused_forward.1} parent=1 // loop_exit
      _
    %1528 = vsyncpa [#allocation4], 1
    %s1529 = scalar_lea.sflag [#allocation4], 1
    %1530 = vsyncpa %s1529, 1

</llo_original>
